<compile_context>
chip_gen: v5e
topology: v5e:2x2
jax: 0.10.0
libtpu: 0.0.40
codegen_flags: <defaults>
</compile_context>

<pallas_src>
import functools

import jax
import jax.numpy as jnp
from jax import lax
from jax.experimental import pallas as pl
from jax.experimental.pallas import tpu as pltpu


def _dwsep_kernel(x_ref, dww_ref, dwb_ref, pww_ref, pwb_ref, o_ref, *, h, w, c):
    """Fused depthwise-3x3 + BN + ReLU6 + pointwise-1x1 + BN + ReLU6 (one image).

    Refs (all VMEM, auto-pipelined by BlockSpec):
      x_ref   : (H+2, W+2, C)  bf16  zero-padded NHWC image slab.
      dww_ref : (9, C)         f32   depthwise weights (BN-folded).
      dwb_ref : (1, C)         f32   depthwise shift (conv bias + BN).
      pww_ref : (C, Cout)      bf16  pointwise weights (BN-folded).
      pwb_ref : (1, Cout)      f32   pointwise shift (conv bias + BN).
      o_ref   : (H*W, Cout)    f32   output, channels on lanes.
    """
    # ---- depthwise 3x3 on the VPU (f32 accumulate) -------------------------
    # The W-shift is materialized once per kw (3 shifted column slabs) instead
    # of 9 misaligned per-tap slices.
    acc = jnp.zeros((h, w, c), jnp.float32)
    for kw in range(3):
        col = x_ref[:, kw:kw + w, :].astype(jnp.float32)          # (H+2, W, C)
        for kh in range(3):
            k = 3 * kh + kw
            tap_w = dww_ref[k:k + 1, :].reshape(1, 1, c)           # (1, 1, C)
            acc = acc + col[kh:kh + h, :, :] * tap_w
    hid = jnp.clip(acc + dwb_ref[...].reshape(1, 1, c), 0.0, 6.0)  # BN + ReLU6

    # ---- pointwise 1x1: channels-on-lanes MXU matmul ------------------------
    hid2 = hid.reshape(h * w, c).astype(jnp.bfloat16)              # (H*W, C)
    y = jnp.dot(hid2, pww_ref[...], preferred_element_type=jnp.float32)
    y = jnp.clip(y + pwb_ref[...], 0.0, 6.0)                       # BN + ReLU6
    o_ref[...] = y.astype(o_ref.dtype)


def _pad_tile_bytes(shape, itemsize):
    """VMEM bytes of one buffer after (8, 128) tiling of the last two dims."""
    s = list(shape)
    s[-1] = -(-s[-1] // 128) * 128
    if len(s) >= 2:
        s[-2] = -(-s[-2] // 8) * 8
    n = 1
    for d in s:
        n *= d
    return n * itemsize


@functools.partial(jax.jit, static_argnames=("strides",))
def depthwise_conv_block(x_nchw, params, strides=(1, 1)):
    """Forward pass matching DepthWiseConvBlock (eval-mode BatchNorm)."""
    if strides != (1, 1):
        # TODO(synk): strides > 1 needs subsampled tap slices; only (1, 1) done.
        raise NotImplementedError("Pallas DepthWiseConvBlock supports strides=(1, 1) only.")

    n, c, h, w = x_nchw.shape
    cout = params["pw_w"].shape[1]

    # Boundary glue: NCHW -> NHWC, zero-pad H and W by 1, store bf16 in HBM,
    # flatten batch into rows so every kernel ref is rank <= 3.
    # (In a fully-NHWC bf16 model this reformat disappears.)
    x_nhwc = jnp.transpose(x_nchw, (0, 2, 3, 1))
    x_pad = jnp.pad(x_nhwc, ((0, 0), (1, 1), (1, 1), (0, 0)))
    x_pad = x_pad.astype(jnp.bfloat16).reshape(n * (h + 2), w + 2, c)

    dw_w = params["dw_w"].reshape(9, c)                        # (9, C)    f32
    dw_shift = params["dw_shift"].reshape(1, c)                # (1, C)    f32
    pw_w = params["pw_w"]                                      # (C, Cout) bf16
    pw_shift = params["pw_shift"].reshape(1, cout)             # (1, Cout) f32

    # VMEM budget: double-buffered blocks + weights with headroom, capped at
    # 48 MiB (v7x has 64 MiB per TC; v5e/v6e have 128 MiB).
    footprint = (2 * _pad_tile_bytes((h + 2, w + 2, c), 2)
                 + 2 * _pad_tile_bytes((h * w, cout), 4)
                 + 2 * _pad_tile_bytes((9, c), 4)
                 + 2 * _pad_tile_bytes((1, c), 4)
                 + 2 * _pad_tile_bytes((c, cout), 2)
                 + 2 * _pad_tile_bytes((1, cout), 4))
    vmem_limit = int(min(48 * 2 ** 20, max(4 * footprint, 16 * 2 ** 20)))

    # Advisory scheduling hint: logical FLOPs / bytes (bf16 activations in).
    flops = 2 * n * h * w * c * 9 + 2 * n * h * w * c * cout
    bytes_accessed = (x_pad.size * 2 + n * h * w * cout * 4
                      + dw_w.size * 4 + dw_shift.size * 4
                      + pw_w.size * 2 + pw_shift.size * 4)

    kernel = functools.partial(_dwsep_kernel, h=h, w=w, c=c)

    # TODO(synk): images too large for VMEM need an H-tiled variant with a
    # manually double-buffered (TH+2)-row halo slab (memory_space=pl.ANY + DMA).
    out_rows = pl.pallas_call(
        kernel,
        out_shape=jax.ShapeDtypeStruct((n * h * w, cout), jnp.float32),
        grid_spec=pltpu.PrefetchScalarGridSpec(
            num_scalar_prefetch=0,
            grid=(n,),
            in_specs=[
                pl.BlockSpec((h + 2, w + 2, c), lambda b: (b, 0, 0)),  # image slab
                pl.BlockSpec((9, c), lambda b: (0, 0)),                # dw weights
                pl.BlockSpec((1, c), lambda b: (0, 0)),                # dw shift
                pl.BlockSpec((c, cout), lambda b: (0, 0)),             # pw weights
                pl.BlockSpec((1, cout), lambda b: (0, 0)),             # pw shift
            ],
            out_specs=pl.BlockSpec((h * w, cout), lambda b: (b, 0)),
        ),
        compiler_params=pltpu.CompilerParams(
            dimension_semantics=("parallel",),
            vmem_limit_bytes=vmem_limit),
        cost_estimate=pl.CostEstimate(flops=flops, transcendentals=0,
                                      bytes_accessed=bytes_accessed),
    )(x_pad, dw_w, dw_shift, pw_w, pw_shift)

    out = out_rows.reshape(n, h, w, cout)
    return jnp.transpose(out, (0, 3, 1, 2))  # back to NCHW to match PyTorch


def init_params(key, in_channels, point_wise_conv_filters, depth_multiplier=1):
    """Synthetic weights matching the PyTorch module, with BatchNorm folded in.

      dw_w     : (3, 3, C)  depthwise weights * bn_scale         (f32)
      dw_shift : (C,)       bn_beta + (conv_bias - mean)*scale   (f32)
      pw_w     : (C, Cout)  pointwise weights * bn_scale         (bf16)
      pw_shift : (Cout,)    bn_beta + (conv_bias - mean)*scale   (f32)
    """
    c = in_channels * depth_multiplier
    cout = point_wise_conv_filters
    eps = 1e-5
    ks = jax.random.split(key, 10)

    dw_w = jax.random.normal(ks[0], (3, 3, c), jnp.float32) * 0.1
    dw_conv_b = jax.random.normal(ks[1], (c,), jnp.float32) * 0.1
    dw_gamma = 1.0 + 0.1 * jax.random.normal(ks[2], (c,), jnp.float32)
    dw_beta = 0.1 * jax.random.normal(ks[3], (c,), jnp.float32)
    dw_mean = 0.1 * jax.random.normal(ks[4], (c,), jnp.float32)
    dw_var = jnp.abs(jax.random.normal(ks[5], (c,), jnp.float32)) + 0.5

    dw_scale = dw_gamma / jnp.sqrt(dw_var + eps)
    dw_w_folded = dw_w * dw_scale
    dw_shift = dw_beta + (dw_conv_b - dw_mean) * dw_scale

    pw_w = jax.random.normal(ks[6], (c, cout), jnp.float32) * 0.1
    pw_conv_b = jax.random.normal(ks[7], (cout,), jnp.float32) * 0.1
    pw_gamma = 1.0 + 0.1 * jax.random.normal(ks[8], (cout,), jnp.float32)
    pw_beta = 0.1 * jax.random.normal(ks[9], (cout,), jnp.float32)
    pw_mean = jnp.zeros((cout,), jnp.float32)
    pw_var = jnp.ones((cout,), jnp.float32)

    pw_scale = pw_gamma / jnp.sqrt(pw_var + eps)
    pw_w_folded = (pw_w * pw_scale).astype(jnp.bfloat16)
    pw_shift = pw_beta + (pw_conv_b - pw_mean) * pw_scale

    return {"dw_w": dw_w_folded, "dw_shift": dw_shift,
            "pw_w": pw_w_folded, "pw_shift": pw_shift}


def _reference(x_nchw, params, strides=(1, 1)):
    """Pure-JAX f32 reference on the same folded weights."""
    c = params["dw_w"].shape[-1]
    x = jnp.transpose(x_nchw, (0, 2, 3, 1)).astype(jnp.float32)
    rhs = params["dw_w"].reshape(3, 3, 1, c)  # HWIO, feature_group_count=C
    dw = lax.conv_general_dilated(
        x, rhs, window_strides=strides, padding=((1, 1), (1, 1)),
        dimension_numbers=("NHWC", "HWIO", "NHWC"), feature_group_count=c,
        precision=lax.Precision.HIGHEST)
    hid = jnp.clip(dw + params["dw_shift"], 0.0, 6.0)
    y = jnp.einsum("nhwc,cd->nhwd", hid, params["pw_w"].astype(jnp.float32),
                   precision=lax.Precision.HIGHEST)
    y = jnp.clip(y + params["pw_shift"], 0.0, 6.0)
    return jnp.transpose(y, (0, 3, 1, 2))


if __name__ == "__main__":
    batch, in_channels, spatial = 2, 4, 16
    point_wise_conv_filters = 8

    key = jax.random.PRNGKey(0)
    k_x, k_p = jax.random.split(key)
    x = jax.random.normal(k_x, (batch, in_channels, spatial, spatial), jnp.float32)
    params = init_params(k_p, in_channels, point_wise_conv_filters)

    out = depthwise_conv_block(x, params, strides=(1, 1))
    out = jax.block_until_ready(out)

    # The kernel stores activations in bf16 in HBM; compare against a pure-JAX
    # f32 reference fed the same bf16-quantized input so the check isolates the
    # in-kernel math (bf16 hid / pw weights on the MXU -> relaxed tolerance).
    x_q = x.astype(jnp.bfloat16).astype(jnp.float32)
    ref = _reference(x_q, params, strides=(1, 1))
    assert out.shape == (batch, point_wise_conv_filters, spatial, spatial)
    assert jnp.allclose(out, ref, atol=2e-2, rtol=2e-2), \
        float(jnp.max(jnp.abs(out - ref)))

    print("KERNEL_OK")
</pallas_src>

<mosaic_0001>
module attributes {stable_mosaic.version = 11 : i64} {
  func.func @_dwsep_kernel(%arg0: i32, %arg1: memref<18x18x4xbf16, #tpu.memory_space<vmem>>, %arg2: memref<9x4xf32, #tpu.memory_space<vmem>>, %arg3: memref<1x4xf32, #tpu.memory_space<vmem>>, %arg4: memref<4x8xbf16, #tpu.memory_space<vmem>>, %arg5: memref<1x8xf32, #tpu.memory_space<vmem>>, %arg6: memref<256x8xf32, #tpu.memory_space<vmem>>) attributes {dimension_semantics = [#tpu.dimension_semantics<parallel>], iteration_bounds = array<i64: 2>, scalar_prefetch = 0 : i64, scratch_operands = 0 : i64, tpu.core_type = #tpu.core_type<tc>, window_params = [{transform_indices = @transform_0, window_bounds = array<i64: 18, 18, 4>}, {pipeline_mode = #tpu.pipeline_mode<synchronous>, transform_indices = @transform_1, window_bounds = array<i64: 9, 4>}, {pipeline_mode = #tpu.pipeline_mode<synchronous>, transform_indices = @transform_2, window_bounds = array<i64: 1, 4>}, {pipeline_mode = #tpu.pipeline_mode<synchronous>, transform_indices = @transform_3, window_bounds = array<i64: 4, 8>}, {pipeline_mode = #tpu.pipeline_mode<synchronous>, transform_indices = @transform_4, window_bounds = array<i64: 1, 8>}, {transform_indices = @transform_5, window_bounds = array<i64: 256, 8>}]} {
    %cst = arith.constant 0.000000e+00 : f32
    %0 = vector.broadcast %cst : f32 to vector<16x16x4xf32>
    %c0 = arith.constant 0 : index
    %c0_0 = arith.constant 0 : index
    %c0_1 = arith.constant 0 : index
    %1 = vector.load %arg1[%c0, %c0_0, %c0_1] : memref<18x18x4xbf16, #tpu.memory_space<vmem>>, vector<18x16x4xbf16>
    %2 = arith.extf %1 : vector<18x16x4xbf16> to vector<18x16x4xf32>
    %c0_2 = arith.constant 0 : index
    %c0_3 = arith.constant 0 : index
    %3 = vector.load %arg2[%c0_2, %c0_3] : memref<9x4xf32, #tpu.memory_space<vmem>>, vector<1x4xf32>
    %4 = vector.shape_cast %3 : vector<1x4xf32> to vector<1x1x4xf32>
    %5 = vector.extract_strided_slice %2 {offsets = [0, 0, 0], sizes = [16, 16, 4], strides = [1, 1, 1]} : vector<18x16x4xf32> to vector<16x16x4xf32>
    %6 = vector.broadcast %4 : vector<1x1x4xf32> to vector<16x16x4xf32>
    %7 = arith.mulf %5, %6 : vector<16x16x4xf32>
    %8 = arith.addf %0, %7 : vector<16x16x4xf32>
    %c3 = arith.constant 3 : index
    %c0_4 = arith.constant 0 : index
    %9 = vector.load %arg2[%c3, %c0_4] : memref<9x4xf32, #tpu.memory_space<vmem>>, vector<1x4xf32>
    %10 = vector.shape_cast %9 : vector<1x4xf32> to vector<1x1x4xf32>
    %11 = vector.extract_strided_slice %2 {offsets = [1, 0, 0], sizes = [16, 16, 4], strides = [1, 1, 1]} : vector<18x16x4xf32> to vector<16x16x4xf32>
    %12 = vector.broadcast %10 : vector<1x1x4xf32> to vector<16x16x4xf32>
    %13 = arith.mulf %11, %12 : vector<16x16x4xf32>
    %14 = arith.addf %8, %13 : vector<16x16x4xf32>
    %c6 = arith.constant 6 : index
    %c0_5 = arith.constant 0 : index
    %15 = vector.load %arg2[%c6, %c0_5] : memref<9x4xf32, #tpu.memory_space<vmem>>, vector<1x4xf32>
    %16 = vector.shape_cast %15 : vector<1x4xf32> to vector<1x1x4xf32>
    %17 = vector.extract_strided_slice %2 {offsets = [2, 0, 0], sizes = [16, 16, 4], strides = [1, 1, 1]} : vector<18x16x4xf32> to vector<16x16x4xf32>
    %18 = vector.broadcast %16 : vector<1x1x4xf32> to vector<16x16x4xf32>
    %19 = arith.mulf %17, %18 : vector<16x16x4xf32>
    %20 = arith.addf %14, %19 : vector<16x16x4xf32>
    %c0_6 = arith.constant 0 : index
    %c1 = arith.constant 1 : index
    %c0_7 = arith.constant 0 : index
    %21 = vector.load %arg1[%c0_6, %c1, %c0_7] : memref<18x18x4xbf16, #tpu.memory_space<vmem>>, vector<18x16x4xbf16>
    %22 = arith.extf %21 : vector<18x16x4xbf16> to vector<18x16x4xf32>
    %c1_8 = arith.constant 1 : index
    %c0_9 = arith.constant 0 : index
    %23 = vector.load %arg2[%c1_8, %c0_9] : memref<9x4xf32, #tpu.memory_space<vmem>>, vector<1x4xf32>
    %24 = vector.shape_cast %23 : vector<1x4xf32> to vector<1x1x4xf32>
    %25 = vector.extract_strided_slice %22 {offsets = [0, 0, 0], sizes = [16, 16, 4], strides = [1, 1, 1]} : vector<18x16x4xf32> to vector<16x16x4xf32>
    %26 = vector.broadcast %24 : vector<1x1x4xf32> to vector<16x16x4xf32>
    %27 = arith.mulf %25, %26 : vector<16x16x4xf32>
    %28 = arith.addf %20, %27 : vector<16x16x4xf32>
    %c4 = arith.constant 4 : index
    %c0_10 = arith.constant 0 : index
    %29 = vector.load %arg2[%c4, %c0_10] : memref<9x4xf32, #tpu.memory_space<vmem>>, vector<1x4xf32>
    %30 = vector.shape_cast %29 : vector<1x4xf32> to vector<1x1x4xf32>
    %31 = vector.extract_strided_slice %22 {offsets = [1, 0, 0], sizes = [16, 16, 4], strides = [1, 1, 1]} : vector<18x16x4xf32> to vector<16x16x4xf32>
    %32 = vector.broadcast %30 : vector<1x1x4xf32> to vector<16x16x4xf32>
    %33 = arith.mulf %31, %32 : vector<16x16x4xf32>
    %34 = arith.addf %28, %33 : vector<16x16x4xf32>
    %c7 = arith.constant 7 : index
    %c0_11 = arith.constant 0 : index
    %35 = vector.load %arg2[%c7, %c0_11] : memref<9x4xf32, #tpu.memory_space<vmem>>, vector<1x4xf32>
    %36 = vector.shape_cast %35 : vector<1x4xf32> to vector<1x1x4xf32>
    %37 = vector.extract_strided_slice %22 {offsets = [2, 0, 0], sizes = [16, 16, 4], strides = [1, 1, 1]} : vector<18x16x4xf32> to vector<16x16x4xf32>
    %38 = vector.broadcast %36 : vector<1x1x4xf32> to vector<16x16x4xf32>
    %39 = arith.mulf %37, %38 : vector<16x16x4xf32>
    %40 = arith.addf %34, %39 : vector<16x16x4xf32>
    %c0_12 = arith.constant 0 : index
    %c2 = arith.constant 2 : index
    %c0_13 = arith.constant 0 : index
    %41 = vector.load %arg1[%c0_12, %c2, %c0_13] : memref<18x18x4xbf16, #tpu.memory_space<vmem>>, vector<18x16x4xbf16>
    %42 = arith.extf %41 : vector<18x16x4xbf16> to vector<18x16x4xf32>
    %c2_14 = arith.constant 2 : index
    %c0_15 = arith.constant 0 : index
    %43 = vector.load %arg2[%c2_14, %c0_15] : memref<9x4xf32, #tpu.memory_space<vmem>>, vector<1x4xf32>
    %44 = vector.shape_cast %43 : vector<1x4xf32> to vector<1x1x4xf32>
    %45 = vector.extract_strided_slice %42 {offsets = [0, 0, 0], sizes = [16, 16, 4], strides = [1, 1, 1]} : vector<18x16x4xf32> to vector<16x16x4xf32>
    %46 = vector.broadcast %44 : vector<1x1x4xf32> to vector<16x16x4xf32>
    %47 = arith.mulf %45, %46 : vector<16x16x4xf32>
    %48 = arith.addf %40, %47 : vector<16x16x4xf32>
    %c5 = arith.constant 5 : index
    %c0_16 = arith.constant 0 : index
    %49 = vector.load %arg2[%c5, %c0_16] : memref<9x4xf32, #tpu.memory_space<vmem>>, vector<1x4xf32>
    %50 = vector.shape_cast %49 : vector<1x4xf32> to vector<1x1x4xf32>
    %51 = vector.extract_strided_slice %42 {offsets = [1, 0, 0], sizes = [16, 16, 4], strides = [1, 1, 1]} : vector<18x16x4xf32> to vector<16x16x4xf32>
    %52 = vector.broadcast %50 : vector<1x1x4xf32> to vector<16x16x4xf32>
    %53 = arith.mulf %51, %52 : vector<16x16x4xf32>
    %54 = arith.addf %48, %53 : vector<16x16x4xf32>
    %c8 = arith.constant 8 : index
    %c0_17 = arith.constant 0 : index
    %55 = vector.load %arg2[%c8, %c0_17] : memref<9x4xf32, #tpu.memory_space<vmem>>, vector<1x4xf32>
    %56 = vector.shape_cast %55 : vector<1x4xf32> to vector<1x1x4xf32>
    %57 = vector.extract_strided_slice %42 {offsets = [2, 0, 0], sizes = [16, 16, 4], strides = [1, 1, 1]} : vector<18x16x4xf32> to vector<16x16x4xf32>
    %58 = vector.broadcast %56 : vector<1x1x4xf32> to vector<16x16x4xf32>
    %59 = arith.mulf %57, %58 : vector<16x16x4xf32>
    %60 = arith.addf %54, %59 : vector<16x16x4xf32>
    %c0_18 = arith.constant 0 : index
    %c0_19 = arith.constant 0 : index
    %61 = vector.load %arg3[%c0_18, %c0_19] : memref<1x4xf32, #tpu.memory_space<vmem>>, vector<1x4xf32>
    %62 = vector.shape_cast %61 : vector<1x4xf32> to vector<1x1x4xf32>
    %63 = vector.broadcast %62 : vector<1x1x4xf32> to vector<16x16x4xf32>
    %64 = arith.addf %60, %63 : vector<16x16x4xf32>
    %cst_20 = arith.constant 0.000000e+00 : f32
    %cst_21 = arith.constant 6.000000e+00 : f32
    %65 = vector.broadcast %cst_20 : f32 to vector<16x16x4xf32>
    %66 = arith.maximumf %65, %64 : vector<16x16x4xf32>
    %67 = vector.broadcast %cst_21 : f32 to vector<16x16x4xf32>
    %68 = arith.minimumf %67, %66 : vector<16x16x4xf32>
    %69 = vector.shape_cast %68 : vector<16x16x4xf32> to vector<256x4xf32>
    %70 = arith.truncf %69 : vector<256x4xf32> to vector<256x4xbf16>
    %c0_22 = arith.constant 0 : index
    %c0_23 = arith.constant 0 : index
    %71 = vector.load %arg4[%c0_22, %c0_23] : memref<4x8xbf16, #tpu.memory_space<vmem>>, vector<4x8xbf16>
    %cst_24 = arith.constant dense<0.000000e+00> : vector<256x8xf32>
    %72 = tpu.matmul %70, %71, %cst_24 {dimension_numbers = #tpu.dot_dimension_numbers<[1], [0], [0], [1], [0, 0, 1, 1], [], []>} : vector<256x4xbf16>, vector<4x8xbf16>, vector<256x8xf32> -> vector<256x8xf32>
    %c0_25 = arith.constant 0 : index
    %c0_26 = arith.constant 0 : index
    %73 = vector.load %arg5[%c0_25, %c0_26] : memref<1x8xf32, #tpu.memory_space<vmem>>, vector<1x8xf32>
    %74 = vector.broadcast %73 : vector<1x8xf32> to vector<256x8xf32>
    %75 = arith.addf %72, %74 : vector<256x8xf32>
    %cst_27 = arith.constant 0.000000e+00 : f32
    %cst_28 = arith.constant 6.000000e+00 : f32
    %76 = vector.broadcast %cst_27 : f32 to vector<256x8xf32>
    %77 = arith.maximumf %76, %75 : vector<256x8xf32>
    %78 = vector.broadcast %cst_28 : f32 to vector<256x8xf32>
    %79 = arith.minimumf %78, %77 : vector<256x8xf32>
    %c0_29 = arith.constant 0 : index
    %c0_30 = arith.constant 0 : index
    %80 = vector.load %arg6[%c0_29, %c0_30] : memref<256x8xf32, #tpu.memory_space<vmem>>, vector<256x8xf32>
    tpu.vector_store %arg6[%c0_29, %c0_30], %79 {strides = array<i32>} : memref<256x8xf32, #tpu.memory_space<vmem>>, vector<256x8xf32>,
    return
  }
  func.func @transform_0(%arg0: i32) -> (i32, i32, i32) {
    %c0_i32 = arith.constant 0 : i32
    %c0_i32_0 = arith.constant 0 : i32
    %c0_i32_1 = arith.constant 0 : i32
    return %arg0, %c0_i32, %c0_i32_0 : i32, i32, i32
  }
  func.func @transform_1(%arg0: i32) -> (i32, i32) {
    %c0_i32 = arith.constant 0 : i32
    %c0_i32_0 = arith.constant 0 : i32
    %c0_i32_1 = arith.constant 0 : i32
    return %c0_i32, %c0_i32_0 : i32, i32
  }
  func.func @transform_2(%arg0: i32) -> (i32, i32) {
    %c0_i32 = arith.constant 0 : i32
    %c0_i32_0 = arith.constant 0 : i32
    %c0_i32_1 = arith.constant 0 : i32
    return %c0_i32, %c0_i32_0 : i32, i32
  }
  func.func @transform_3(%arg0: i32) -> (i32, i32) {
    %c0_i32 = arith.constant 0 : i32
    %c0_i32_0 = arith.constant 0 : i32
    %c0_i32_1 = arith.constant 0 : i32
    return %c0_i32, %c0_i32_0 : i32, i32
  }
  func.func @transform_4(%arg0: i32) -> (i32, i32) {
    %c0_i32 = arith.constant 0 : i32
    %c0_i32_0 = arith.constant 0 : i32
    %c0_i32_1 = arith.constant 0 : i32
    return %c0_i32, %c0_i32_0 : i32, i32
  }
  func.func @transform_5(%arg0: i32) -> (i32, i32) {
    %c0_i32 = arith.constant 0 : i32
    %c0_i32_0 = arith.constant 0 : i32
    return %arg0, %c0_i32 : i32, i32
  }
}

</mosaic_0001>

<llo_original>
// kernel: depthwise_conv_block.1
$region0: #{depthwise_conv_block.1}
  #allocation0 [shape = 'u32[]', space=smem, size = 0x4, offset = 0x4, fixed_abs, tag = 'smem constant byte address 0x4 - core index']
  #allocation1 [shape = 'u32[72,128]{1,0:T(1,128)}', space=vmem, size = 0x9000, scoped, tag = 'internal scratch']
  %s0 = inlined_call_operand.vmem [shape: bf16[36,18,4], index: 0, kind: input, shape index: {}]
  %s1 = inlined_call_operand.vmem [shape: f32[9,4], index: 1, kind: input, shape index: {}]
  %s2 = inlined_call_operand.vmem [shape: f32[1,4], index: 2, kind: input, shape index: {}]
  %s3 = inlined_call_operand.vmem [shape: bf16[4,8], index: 3, kind: input, shape index: {}]
  %s4 = inlined_call_operand.vmem [shape: f32[1,8], index: 4, kind: input, shape index: {}]
  %s5 = inlined_call_operand.vmem [shape: f32[512,8], index: 5, kind: output, shape index: {}]
  %s6 = sld [smem:[#allocation0]]
  $region53: #{depthwise_conv_block.1} parent=0
    _
  %s8 = ssub.s32 1, %s6
  %s9 = scalar_select 0, %s8, %s6
  loop: start=0, step=1, limit=4
  $region2: #{depthwise_conv_block.1} parent=0 // loop_pre_header
    _
  $region3: #{depthwise_conv_block.1} parent=0 // loop_header
    %s11 = sphi 0, %s15
    %p12 = scmp.ge.s32.totalorder %s11, 4
    %s21 = sphi 0, %s23
    %s24 = sphi 0, %s21
    %s25 = sphi 0, %s24
    %s41 = sphi 0, %s25
    %s45 = sphi 0, %s45
    %s47 = sphi 0, %s45
    %s48 = sphi 0, %s47
    %s62 = sphi 0, %s48
    %s66 = sphi 0, %s66
    %s68 = sphi 0, %s66
    %s69 = sphi 0, %s68
    %s83 = sphi 0, %s69
    %s87 = sphi 0, %s87
    %s89 = sphi 0, %s87
    %s90 = sphi 0, %s89
    %s104 = sphi 0, %s90
    %s108 = sphi 0, %s108
    %s110 = sphi 0, %s108
    %s111 = sphi 0, %s110
    %s125 = sphi 0, %s111
    %s131 = sphi 0, %s133
    %s134 = sphi 0, %s131
    %s135 = sphi 0, %s134
    %s151 = sphi 0, %s135
  $region4: #{depthwise_conv_block.1} parent=0 // loop_header_branch
    %14 = sbr.rel (%p12) target = $region8
  $region5: #{depthwise_conv_block.1} parent=0 // loop_body
    %s16 = ssub.s32 %s11, 1
    %s17 = ssub.s32 %s11, 2
    %s18 = sadd.s32 %s11, 1
    %s19 = ssub.s32 %s11, %s18
    %p20 = scmp.eq.s32.totalorder %s19, 0
    %s22 = sadd.s32 %s21, 1
    %s23 = scalar_select %p20, %s21, %s22
    %p26 = pneg %p20
    %p27 = scmp.eq.s32.totalorder %s11, 1
    %p28 = por %p26, %p27
    %p29 = scmp.ne.s32.totalorder %s21, %s24
    %p30 = scmp.eq.s32.totalorder %s11, 0
    %p31 = por %p29, %p30
    %p32 = scmp.ne.s32.totalorder %s21, %s24
    %p33 = scmp.eq.s32.totalorder %s16, 1
    %p34 = por %p32, %p33
    %p35 = scmp.ne.s32.totalorder %s24, %s25
    %p36 = scmp.eq.s32.totalorder %s16, 0
    %p37 = por %p35, %p36
    %p38 = scmp.ne.s32.totalorder %s24, %s25
    %p39 = scmp.eq.s32.totalorder %s17, 1
    %p40 = por %p38, %p39
    %p42 = scmp.ne.s32.totalorder %s25, %s41
    %p43 = scmp.eq.s32.totalorder %s17, 0
    %p44 = por %p42, %p43
    %s46 = sadd.s32 %s45, 1
    %p49 = scmp.eq.s32.totalorder %s11, 1
    %p50 = scmp.ne.s32.totalorder %s45, %s47
    %p51 = scmp.eq.s32.totalorder %s11, 0
    %p52 = por %p50, %p51
    %p53 = scmp.ne.s32.totalorder %s45, %s47
    %p54 = scmp.eq.s32.totalorder %s16, 1
    %p55 = por %p53, %p54
    %p56 = scmp.ne.s32.totalorder %s47, %s48
    %p57 = scmp.eq.s32.totalorder %s16, 0
    %p58 = por %p56, %p57
    %p59 = scmp.ne.s32.totalorder %s47, %s48
    %p60 = scmp.eq.s32.totalorder %s17, 1
    %p61 = por %p59, %p60
    %p63 = scmp.ne.s32.totalorder %s48, %s62
    %p64 = scmp.eq.s32.totalorder %s17, 0
    %p65 = por %p63, %p64
    %s67 = sadd.s32 %s66, 1
    %p70 = scmp.eq.s32.totalorder %s11, 1
    %p71 = scmp.ne.s32.totalorder %s66, %s68
    %p72 = scmp.eq.s32.totalorder %s11, 0
    %p73 = por %p71, %p72
    %p74 = scmp.ne.s32.totalorder %s66, %s68
    %p75 = scmp.eq.s32.totalorder %s16, 1
    %p76 = por %p74, %p75
    %p77 = scmp.ne.s32.totalorder %s68, %s69
    %p78 = scmp.eq.s32.totalorder %s16, 0
    %p79 = por %p77, %p78
    %p80 = scmp.ne.s32.totalorder %s68, %s69
    %p81 = scmp.eq.s32.totalorder %s17, 1
    %p82 = por %p80, %p81
    %p84 = scmp.ne.s32.totalorder %s69, %s83
    %p85 = scmp.eq.s32.totalorder %s17, 0
    %p86 = por %p84, %p85
    %s88 = sadd.s32 %s87, 1
    %p91 = scmp.eq.s32.totalorder %s11, 1
    %p92 = scmp.ne.s32.totalorder %s87, %s89
    %p93 = scmp.eq.s32.totalorder %s11, 0
    %p94 = por %p92, %p93
    %p95 = scmp.ne.s32.totalorder %s87, %s89
    %p96 = scmp.eq.s32.totalorder %s16, 1
    %p97 = por %p95, %p96
    %p98 = scmp.ne.s32.totalorder %s89, %s90
    %p99 = scmp.eq.s32.totalorder %s16, 0
    %p100 = por %p98, %p99
    %p101 = scmp.ne.s32.totalorder %s89, %s90
    %p102 = scmp.eq.s32.totalorder %s17, 1
    %p103 = por %p101, %p102
    %p105 = scmp.ne.s32.totalorder %s90, %s104
    %p106 = scmp.eq.s32.totalorder %s17, 0
    %p107 = por %p105, %p106
    %s109 = sadd.s32 %s108, 1
    %p112 = scmp.eq.s32.totalorder %s11, 1
    %p113 = scmp.ne.s32.totalorder %s108, %s110
    %p114 = scmp.eq.s32.totalorder %s11, 0
    %p115 = por %p113, %p114
    %p116 = scmp.ne.s32.totalorder %s108, %s110
    %p117 = scmp.eq.s32.totalorder %s16, 1
    %p118 = por %p116, %p117
    %p119 = scmp.ne.s32.totalorder %s110, %s111
    %p120 = scmp.eq.s32.totalorder %s16, 0
    %p121 = por %p119, %p120
    %p122 = scmp.ne.s32.totalorder %s110, %s111
    %p123 = scmp.eq.s32.totalorder %s17, 1
    %p124 = por %p122, %p123
    %p126 = scmp.ne.s32.totalorder %s111, %s125
    %p127 = scmp.eq.s32.totalorder %s17, 0
    %p128 = por %p126, %p127
    %s129 = ssub.s32 %s11, %s18
    %p130 = scmp.eq.s32.totalorder %s129, 0
    %s132 = sadd.s32 %s131, 1
    %s133 = scalar_select %p130, %s131, %s132
    %p136 = pneg %p130
    %p137 = scmp.eq.s32.totalorder %s11, 1
    %p138 = por %p136, %p137
    %p139 = scmp.ne.s32.totalorder %s131, %s134
    %p140 = scmp.eq.s32.totalorder %s11, 0
    %p141 = por %p139, %p140
    %p142 = scmp.ne.s32.totalorder %s131, %s134
    %p143 = scmp.eq.s32.totalorder %s16, 1
    %p144 = por %p142, %p143
    %p145 = scmp.ne.s32.totalorder %s134, %s135
    %p146 = scmp.eq.s32.totalorder %s16, 0
    %p147 = por %p145, %p146
    %p148 = scmp.ne.s32.totalorder %s134, %s135
    %p149 = scmp.eq.s32.totalorder %s17, 1
    %p150 = por %p148, %p149
    %p152 = scmp.ne.s32.totalorder %s135, %s151
    %p153 = scmp.eq.s32.totalorder %s17, 0
    %p154 = por %p152, %p153
    %p155 = scmp.le.s32.totalorder 1, %s11
    %p156 = scmp.lt.s32.totalorder %s11, 3
    %p157 = pnand %p155, %p156
    %p158 = pneg %p157
    // Predicated region
    $region9: #{depthwise_conv_block.1} parent=5 // pred_check
      _
    $region10: #{depthwise_conv_block.1} parent=5 // pred_check_branch
      %160 = sbr.rel (%p157) target = $region12
    $region11: #{depthwise_conv_block.1} parent=5 // pred_region
      %s161 = ssub.s32 %s11, 1
      // Predicated region
      $region13: #{depthwise_conv_block.1} parent=11 // pred_check
        %p162 = pneg %p58
      $region14: #{depthwise_conv_block.1} parent=11 // pred_check_branch
        %164 = sbr.rel (%p162) target = $region16
      $region15: #{depthwise_conv_block.1} parent=11 // pred_region
        _
      $region16: #{depthwise_conv_block.1} parent=11 // pred_fallthru
        _
      // Predicated region
      $region17: #{depthwise_conv_block.1} parent=11 // pred_check
        %p165 = pneg %p79
      $region18: #{depthwise_conv_block.1} parent=11 // pred_check_branch
        %167 = sbr.rel (%p165) target = $region20
      $region19: #{depthwise_conv_block.1} parent=11 // pred_region
        _
      $region20: #{depthwise_conv_block.1} parent=11 // pred_fallthru
        _
      // Predicated region
      $region21: #{depthwise_conv_block.1} parent=11 // pred_check
        %p168 = pneg %p100
      $region22: #{depthwise_conv_block.1} parent=11 // pred_check_branch
        %170 = sbr.rel (%p168) target = $region24
      $region23: #{depthwise_conv_block.1} parent=11 // pred_region
        _
      $region24: #{depthwise_conv_block.1} parent=11 // pred_fallthru
        _
      // Predicated region
      $region25: #{depthwise_conv_block.1} parent=11 // pred_check
        %p171 = pneg %p121
      $region26: #{depthwise_conv_block.1} parent=11 // pred_check_branch
        %173 = sbr.rel (%p171) target = $region28
      $region27: #{depthwise_conv_block.1} parent=11 // pred_region
        _
      $region28: #{depthwise_conv_block.1} parent=11 // pred_fallthru
        _
    $region12: #{depthwise_conv_block.1} parent=5 // pred_fallthru
      _
    %p174 = scmp.lt.s32.totalorder %s11, 2
    // Predicated region
    $region29: #{depthwise_conv_block.1} parent=5 // pred_check
      %p175 = pneg %p174
    $region30: #{depthwise_conv_block.1} parent=5 // pred_check_branch
      %177 = sbr.rel (%p175) target = $region32
    $region31: #{depthwise_conv_block.1} parent=5 // pred_region
      // Predicated region
      $region33: #{depthwise_conv_block.1} parent=31 // pred_check
        %p178 = pneg %p31
      $region34: #{depthwise_conv_block.1} parent=31 // pred_check_branch
        %180 = sbr.rel (%p178) target = $region36
      $region35: #{depthwise_conv_block.1} parent=31 // pred_region
        %s181 = smul.u32 18, %s11
        %p182 = scmp.lt.s32.totalorder %s181, 35
        %s183 = scalar_select %p182, %s181, 35
        %s184 = smul.addr %s183, 3
        %s185 = smul.addr %s184, 4
        %s186 = scalar_lea.vmem %s0, %s185
        %s187 = smul.u32 18, %s11
      $region36: #{depthwise_conv_block.1} parent=31 // pred_fallthru
        _
    $region32: #{depthwise_conv_block.1} parent=5 // pred_fallthru
      _
    %p188 = scmp.le.s32.totalorder 1, %s11
    %p189 = scmp.lt.s32.totalorder %s11, 3
    %p190 = pnand %p188, %p189
    %p191 = pneg %p190
    // Predicated region
    $region37: #{depthwise_conv_block.1} parent=5 // pred_check
      _
    $region38: #{depthwise_conv_block.1} parent=5 // pred_check_branch
      %193 = sbr.rel (%p190) target = $region40
    $region39: #{depthwise_conv_block.1} parent=5 // pred_region
      %s194 = ssub.s32 %s11, 1
      %s195 = smul.u32 18, %s16
      %p196 = scmp.lt.s32.totalorder %s195, 35
      %s197 = scalar_select %p196, %s195, 35
      %s198 = smul.addr %s197, 3
      %s199 = smul.addr %s198, 4
      %s200 = scalar_lea.vmem %s0, %s199
      %p201 = pneg %p37
      %p202 = pneg %p34
      %p203 = pneg %p58
      %p204 = pneg %p55
      %p205 = pneg %p79
      %p206 = pneg %p76
      %p207 = pneg %p100
      %p208 = pneg %p97
      %p209 = pneg %p121
      %p210 = pneg %p118
      %p211 = pneg %p147
      %p212 = pneg %p144
      %s213 = smul.u32 32, %s16
      %p214 = scmp.lt.s32.totalorder %s213, 63
      %s215 = scalar_select %p214, %s213, 63
      %s216 = smul.addr %s215, 8
      %s217 = scalar_lea.vmem %s5, %s216
      %s218 = smul.u32 18, %s16
      %p219 = scmp.lt.s32.totalorder %s218, 35
      %s220 = scalar_select %p219, %s218, 35
      %s221 = smul.addr %s220, 3
      %s222 = smul.addr %s221, 4
      %s223 = scalar_lea.vmem %s0, %s222
      %s224 = smul.u32 18, %s16
      %s225 = smul.u32 32, %s16
      %p226 = scmp.lt.s32.totalorder %s225, 63
      %s227 = scalar_select %p226, %s225, 63
      %s228 = smul.addr %s227, 8
      %s229 = scalar_lea.vmem %s5, %s228
      %s230 = smul.u32 32, %s16
      %v232 = vld [vmem:[%s223] sm:$0xf]
      %v233 = vld [vmem:[%s223 + $0x4] sm:$0xf]
      %v234 = vld [vmem:[%s223 + $0xc] sm:$0xf]
      %v235 = vld [vmem:[%s223 + $0x10] sm:$0xf]
      %v236 = vld [vmem:[%s223 + $0x18] sm:$0xf]
      %v237 = vld [vmem:[%s223 + $0x1c] sm:$0xf]
      %v238 = vld [vmem:[%s223 + $0x24] sm:$0xf]
      %v239 = vld [vmem:[%s223 + $0x28] sm:$0xf]
      %v240 = vld [vmem:[%s223 + $0x30] sm:$0xf]
      %v241 = vld [vmem:[%s223 + $0x34] sm:$0xf]
      %v242 = vld [vmem:[%s223 + $0x3c] sm:$0xf]
      %v243 = vld [vmem:[%s223 + $0x40] sm:$0xf]
      %v244 = vld [vmem:[%s223 + $0x48] sm:$0xf]
      %v245 = vld [vmem:[%s223 + $0x4c] sm:$0xf]
      %v246 = vld [vmem:[%s223 + $0x54] sm:$0xf]
      %v247 = vld [vmem:[%s223 + $0x58] sm:$0xf]
      %v248 = vld [vmem:[%s223 + $0x60] sm:$0xf]
      %v249 = vld [vmem:[%s223 + $0x64] sm:$0xf]
      %v250 = vld [vmem:[%s223 + $0x6c] sm:$0xf]
      %v251 = vld [vmem:[%s223 + $0x70] sm:$0xf]
      %v252 = vld [vmem:[%s223 + $0x78] sm:$0xf]
      %v253 = vld [vmem:[%s223 + $0x7c] sm:$0xf]
      %v254 = vld [vmem:[%s223 + $0x84] sm:$0xf]
      %v255 = vld [vmem:[%s223 + $0x88] sm:$0xf]
      %v256 = vld [vmem:[%s223 + $0x90] sm:$0xf]
      %v257 = vld [vmem:[%s223 + $0x94] sm:$0xf]
      %v258 = vld [vmem:[%s223 + $0x9c] sm:$0xf]
      %v259 = vld [vmem:[%s223 + $0xa0] sm:$0xf]
      %v260 = vld [vmem:[%s223 + $0xa8] sm:$0xf]
      %v261 = vld [vmem:[%s223 + $0xac] sm:$0xf]
      %v262 = vld [vmem:[%s223 + $0xb4] sm:$0xf]
      %v263 = vld [vmem:[%s223 + $0xb8] sm:$0xf]
      %v264 = vld [vmem:[%s223 + $0xc0] sm:$0xf]
      %v265 = vld [vmem:[%s223 + $0xc4] sm:$0xf]
      %v266 = vld [vmem:[%s223 + $0xcc] sm:$0xf]
      %v267 = vld [vmem:[%s223 + $0xd0] sm:$0xf]
      %v268 = vunpack.c.l.bf16 %v232
      %v269 = vunpack.c.l.bf16 %v233
      %v270 = vunpack.c.l.bf16 %v234
      %v271 = vunpack.c.l.bf16 %v235
      %v272 = vunpack.c.l.bf16 %v236
      %v273 = vunpack.c.l.bf16 %v237
      %v274 = vunpack.c.l.bf16 %v238
      %v275 = vunpack.c.l.bf16 %v239
      %v276 = vunpack.c.l.bf16 %v240
      %v277 = vunpack.c.l.bf16 %v241
      %v278 = vunpack.c.l.bf16 %v242
      %v279 = vunpack.c.l.bf16 %v243
      %v280 = vunpack.c.l.bf16 %v244
      %v281 = vunpack.c.l.bf16 %v245
      %v282 = vunpack.c.l.bf16 %v246
      %v283 = vunpack.c.l.bf16 %v247
      %v284 = vunpack.c.l.bf16 %v248
      %v285 = vunpack.c.l.bf16 %v249
      %v286 = vunpack.c.l.bf16 %v250
      %v287 = vunpack.c.l.bf16 %v251
      %v288 = vunpack.c.l.bf16 %v252
      %v289 = vunpack.c.l.bf16 %v253
      %v290 = vunpack.c.l.bf16 %v254
      %v291 = vunpack.c.l.bf16 %v255
      %v292 = vunpack.c.l.bf16 %v256
      %v293 = vunpack.c.l.bf16 %v257
      %v294 = vunpack.c.l.bf16 %v258
      %v295 = vunpack.c.l.bf16 %v259
      %v296 = vunpack.c.l.bf16 %v260
      %v297 = vunpack.c.l.bf16 %v261
      %v298 = vunpack.c.l.bf16 %v262
      %v299 = vunpack.c.l.bf16 %v263
      %v300 = vunpack.c.l.bf16 %v264
      %v301 = vunpack.c.l.bf16 %v265
      %v302 = vunpack.c.l.bf16 %v266
      %v303 = vunpack.c.l.bf16 %v267
      %v304 = vld [vmem:[%s1] sm:$0x1]
      %v305 = vperm.slane %v304, 0
      %v306 = vmul.f32 %v268, %v305
      %v307 = vmul.f32 %v269, %v305
      %v308 = vmul.f32 %v270, %v305
      %v309 = vmul.f32 %v271, %v305
      %v310 = vmul.f32 %v272, %v305
      %v311 = vmul.f32 %v273, %v305
      %v312 = vmul.f32 %v274, %v305
      %v313 = vmul.f32 %v275, %v305
      %v314 = vmul.f32 %v276, %v305
      %v315 = vmul.f32 %v277, %v305
      %v316 = vmul.f32 %v278, %v305
      %v317 = vmul.f32 %v279, %v305
      %v318 = vmul.f32 %v280, %v305
      %v319 = vmul.f32 %v281, %v305
      %v320 = vmul.f32 %v282, %v305
      %v321 = vmul.f32 %v283, %v305
      %v322 = vmul.f32 %v284, %v305
      %v323 = vmul.f32 %v285, %v305
      %v324 = vmul.f32 %v286, %v305
      %v325 = vmul.f32 %v287, %v305
      %v326 = vmul.f32 %v288, %v305
      %v327 = vmul.f32 %v289, %v305
      %v328 = vmul.f32 %v290, %v305
      %v329 = vmul.f32 %v291, %v305
      %v330 = vmul.f32 %v292, %v305
      %v331 = vmul.f32 %v293, %v305
      %v332 = vmul.f32 %v294, %v305
      %v333 = vmul.f32 %v295, %v305
      %v334 = vmul.f32 %v296, %v305
      %v335 = vmul.f32 %v297, %v305
      %v336 = vmul.f32 %v298, %v305
      %v337 = vmul.f32 %v299, %v305
      %v338 = vadd.f32 %v306, 0.0
      %v339 = vadd.f32 %v307, 0.0
      %v340 = vadd.f32 %v308, 0.0
      %v341 = vadd.f32 %v309, 0.0
      %v342 = vadd.f32 %v310, 0.0
      %v343 = vadd.f32 %v311, 0.0
      %v344 = vadd.f32 %v312, 0.0
      %v345 = vadd.f32 %v313, 0.0
      %v346 = vadd.f32 %v314, 0.0
      %v347 = vadd.f32 %v315, 0.0
      %v348 = vadd.f32 %v316, 0.0
      %v349 = vadd.f32 %v317, 0.0
      %v350 = vadd.f32 %v318, 0.0
      %v351 = vadd.f32 %v319, 0.0
      %v352 = vadd.f32 %v320, 0.0
      %v353 = vadd.f32 %v321, 0.0
      %v354 = vadd.f32 %v322, 0.0
      %v355 = vadd.f32 %v323, 0.0
      %v356 = vadd.f32 %v324, 0.0
      %v357 = vadd.f32 %v325, 0.0
      %v358 = vadd.f32 %v326, 0.0
      %v359 = vadd.f32 %v327, 0.0
      %v360 = vadd.f32 %v328, 0.0
      %v361 = vadd.f32 %v329, 0.0
      %v362 = vadd.f32 %v330, 0.0
      %v363 = vadd.f32 %v331, 0.0
      %v364 = vadd.f32 %v332, 0.0
      %v365 = vadd.f32 %v333, 0.0
      %v366 = vadd.f32 %v334, 0.0
      %v367 = vadd.f32 %v335, 0.0
      %v368 = vadd.f32 %v336, 0.0
      %v369 = vadd.f32 %v337, 0.0
      %v370 = vld [vmem:[%s1 + $0x3] sm:$0x1]
      %v371 = vperm.slane %v370, 0
      %v372 = vmul.f32 %v270, %v371
      %v373 = vmul.f32 %v271, %v371
      %v374 = vmul.f32 %v272, %v371
      %v375 = vmul.f32 %v273, %v371
      %v376 = vmul.f32 %v274, %v371
      %v377 = vmul.f32 %v275, %v371
      %v378 = vmul.f32 %v276, %v371
      %v379 = vmul.f32 %v277, %v371
      %v380 = vmul.f32 %v278, %v371
      %v381 = vmul.f32 %v279, %v371
      %v382 = vmul.f32 %v280, %v371
      %v383 = vmul.f32 %v281, %v371
      %v384 = vmul.f32 %v282, %v371
      %v385 = vmul.f32 %v283, %v371
      %v386 = vmul.f32 %v284, %v371
      %v387 = vmul.f32 %v285, %v371
      %v388 = vmul.f32 %v286, %v371
      %v389 = vmul.f32 %v287, %v371
      %v390 = vmul.f32 %v288, %v371
      %v391 = vmul.f32 %v289, %v371
      %v392 = vmul.f32 %v290, %v371
      %v393 = vmul.f32 %v291, %v371
      %v394 = vmul.f32 %v292, %v371
      %v395 = vmul.f32 %v293, %v371
      %v396 = vmul.f32 %v294, %v371
      %v397 = vmul.f32 %v295, %v371
      %v398 = vmul.f32 %v296, %v371
      %v399 = vmul.f32 %v297, %v371
      %v400 = vmul.f32 %v298, %v371
      %v401 = vmul.f32 %v299, %v371
      %v402 = vmul.f32 %v300, %v371
      %v403 = vmul.f32 %v301, %v371
      %v404 = vadd.f32 %v338, %v372
      %v405 = vadd.f32 %v339, %v373
      %v406 = vadd.f32 %v340, %v374
      %v407 = vadd.f32 %v341, %v375
      %v408 = vadd.f32 %v342, %v376
      %v409 = vadd.f32 %v343, %v377
      %v410 = vadd.f32 %v344, %v378
      %v411 = vadd.f32 %v345, %v379
      %v412 = vadd.f32 %v346, %v380
      %v413 = vadd.f32 %v347, %v381
      %v414 = vadd.f32 %v348, %v382
      %v415 = vadd.f32 %v349, %v383
      %v416 = vadd.f32 %v350, %v384
      %v417 = vadd.f32 %v351, %v385
      %v418 = vadd.f32 %v352, %v386
      %v419 = vadd.f32 %v353, %v387
      %v420 = vadd.f32 %v354, %v388
      %v421 = vadd.f32 %v355, %v389
      %v422 = vadd.f32 %v356, %v390
      %v423 = vadd.f32 %v357, %v391
      %v424 = vadd.f32 %v358, %v392
      %v425 = vadd.f32 %v359, %v393
      %v426 = vadd.f32 %v360, %v394
      %v427 = vadd.f32 %v361, %v395
      %v428 = vadd.f32 %v362, %v396
      %v429 = vadd.f32 %v363, %v397
      %v430 = vadd.f32 %v364, %v398
      %v431 = vadd.f32 %v365, %v399
      %v432 = vadd.f32 %v366, %v400
      %v433 = vadd.f32 %v367, %v401
      %v434 = vadd.f32 %v368, %v402
      %v435 = vadd.f32 %v369, %v403
      %v436 = vld [vmem:[%s1 + $0x6] sm:$0x1]
      %v437 = vperm.slane %v436, 0
      %v438 = vmul.f32 %v272, %v437
      %v439 = vmul.f32 %v273, %v437
      %v440 = vmul.f32 %v274, %v437
      %v441 = vmul.f32 %v275, %v437
      %v442 = vmul.f32 %v276, %v437
      %v443 = vmul.f32 %v277, %v437
      %v444 = vmul.f32 %v278, %v437
      %v445 = vmul.f32 %v279, %v437
      %v446 = vmul.f32 %v280, %v437
      %v447 = vmul.f32 %v281, %v437
      %v448 = vmul.f32 %v282, %v437
      %v449 = vmul.f32 %v283, %v437
      %v450 = vmul.f32 %v284, %v437
      %v451 = vmul.f32 %v285, %v437
      %v452 = vmul.f32 %v286, %v437
      %v453 = vmul.f32 %v287, %v437
      %v454 = vmul.f32 %v288, %v437
      %v455 = vmul.f32 %v289, %v437
      %v456 = vmul.f32 %v290, %v437
      %v457 = vmul.f32 %v291, %v437
      %v458 = vmul.f32 %v292, %v437
      %v459 = vmul.f32 %v293, %v437
      %v460 = vmul.f32 %v294, %v437
      %v461 = vmul.f32 %v295, %v437
      %v462 = vmul.f32 %v296, %v437
      %v463 = vmul.f32 %v297, %v437
      %v464 = vmul.f32 %v298, %v437
      %v465 = vmul.f32 %v299, %v437
      %v466 = vmul.f32 %v300, %v437
      %v467 = vmul.f32 %v301, %v437
      %v468 = vmul.f32 %v302, %v437
      %v469 = vmul.f32 %v303, %v437
      %v470 = vadd.f32 %v404, %v438
      %v471 = vadd.f32 %v405, %v439
      %v472 = vadd.f32 %v406, %v440
      %v473 = vadd.f32 %v407, %v441
      %v474 = vadd.f32 %v408, %v442
      %v475 = vadd.f32 %v409, %v443
      %v476 = vadd.f32 %v410, %v444
      %v477 = vadd.f32 %v411, %v445
      %v478 = vadd.f32 %v412, %v446
      %v479 = vadd.f32 %v413, %v447
      %v480 = vadd.f32 %v414, %v448
      %v481 = vadd.f32 %v415, %v449
      %v482 = vadd.f32 %v416, %v450
      %v483 = vadd.f32 %v417, %v451
      %v484 = vadd.f32 %v418, %v452
      %v485 = vadd.f32 %v419, %v453
      %v486 = vadd.f32 %v420, %v454
      %v487 = vadd.f32 %v421, %v455
      %v488 = vadd.f32 %v422, %v456
      %v489 = vadd.f32 %v423, %v457
      %v490 = vadd.f32 %v424, %v458
      %v491 = vadd.f32 %v425, %v459
      %v492 = vadd.f32 %v426, %v460
      %v493 = vadd.f32 %v427, %v461
      %v494 = vadd.f32 %v428, %v462
      %v495 = vadd.f32 %v429, %v463
      %v496 = vadd.f32 %v430, %v464
      %v497 = vadd.f32 %v431, %v465
      %v498 = vadd.f32 %v432, %v466
      %v499 = vadd.f32 %v433, %v467
      %v500 = vadd.f32 %v434, %v468
      %v501 = vadd.f32 %v435, %v469
      %v502 = vld [vmem:[%s223 + $0x8] sm:$0x1]
      %v503 = vld [vmem:[%s223 + $0x14] sm:$0x1]
      %v504 = vld [vmem:[%s223 + $0x20] sm:$0x1]
      %v505 = vld [vmem:[%s223 + $0x2c] sm:$0x1]
      %v506 = vld [vmem:[%s223 + $0x38] sm:$0x1]
      %v507 = vld [vmem:[%s223 + $0x44] sm:$0x1]
      %v508 = vld [vmem:[%s223 + $0x50] sm:$0x1]
      %v509 = vld [vmem:[%s223 + $0x5c] sm:$0x1]
      %v510 = vld [vmem:[%s223 + $0x68] sm:$0x1]
      %v511 = vld [vmem:[%s223 + $0x74] sm:$0x1]
      %v512 = vld [vmem:[%s223 + $0x80] sm:$0x1]
      %v513 = vld [vmem:[%s223 + $0x8c] sm:$0x1]
      %v514 = vld [vmem:[%s223 + $0x98] sm:$0x1]
      %v515 = vld [vmem:[%s223 + $0xa4] sm:$0x1]
      %v516 = vld [vmem:[%s223 + $0xb0] sm:$0x1]
      %v517 = vld [vmem:[%s223 + $0xbc] sm:$0x1]
      %v518 = vld [vmem:[%s223 + $0xc8] sm:$0x1]
      %v519 = vld [vmem:[%s223 + $0xd4] sm:$0x1]
      %v520 = vunpack.c.l.bf16 %v502
      %v521 = vunpack.c.l.bf16 %v503
      %v522 = vunpack.c.l.bf16 %v504
      %v523 = vunpack.c.l.bf16 %v505
      %v524 = vunpack.c.l.bf16 %v506
      %v525 = vunpack.c.l.bf16 %v507
      %v526 = vunpack.c.l.bf16 %v508
      %v527 = vunpack.c.l.bf16 %v509
      %v528 = vunpack.c.l.bf16 %v510
      %v529 = vunpack.c.l.bf16 %v511
      %v530 = vunpack.c.l.bf16 %v512
      %v531 = vunpack.c.l.bf16 %v513
      %v532 = vunpack.c.l.bf16 %v514
      %v533 = vunpack.c.l.bf16 %v515
      %v534 = vunpack.c.l.bf16 %v516
      %v535 = vunpack.c.l.bf16 %v517
      %v536 = vunpack.c.l.bf16 %v518
      %v537 = vunpack.c.l.bf16 %v519
      %v538 = vld [vmem:[%s1 + $0x1] sm:$0x1]
      %v539 = vperm.slane %v538, 0
      %v540 = vmul.f32 %v268, %v539
      %v541 = vmul.f32 %v269, %v539
      %v542 = vmul.f32 %v520, %v539
      %v543 = vmul.f32 %v270, %v539
      %v544 = vmul.f32 %v271, %v539
      %v545 = vmul.f32 %v521, %v539
      %v546 = vmul.f32 %v272, %v539
      %v547 = vmul.f32 %v273, %v539
      %v548 = vmul.f32 %v522, %v539
      %v549 = vmul.f32 %v274, %v539
      %v550 = vmul.f32 %v275, %v539
      %v551 = vmul.f32 %v523, %v539
      %v552 = vmul.f32 %v276, %v539
      %v553 = vmul.f32 %v277, %v539
      %v554 = vmul.f32 %v524, %v539
      %v555 = vmul.f32 %v278, %v539
      %v556 = vmul.f32 %v279, %v539
      %v557 = vmul.f32 %v525, %v539
      %v558 = vmul.f32 %v280, %v539
      %v559 = vmul.f32 %v281, %v539
      %v560 = vmul.f32 %v526, %v539
      %v561 = vmul.f32 %v282, %v539
      %v562 = vmul.f32 %v283, %v539
      %v563 = vmul.f32 %v527, %v539
      %v564 = vmul.f32 %v284, %v539
      %v565 = vmul.f32 %v285, %v539
      %v566 = vmul.f32 %v528, %v539
      %v567 = vmul.f32 %v286, %v539
      %v568 = vmul.f32 %v287, %v539
      %v569 = vmul.f32 %v529, %v539
      %v570 = vmul.f32 %v288, %v539
      %v571 = vmul.f32 %v289, %v539
      %v572 = vmul.f32 %v530, %v539
      %v573 = vmul.f32 %v290, %v539
      %v574 = vmul.f32 %v291, %v539
      %v575 = vmul.f32 %v531, %v539
      %v576 = vmul.f32 %v292, %v539
      %v577 = vmul.f32 %v293, %v539
      %v578 = vmul.f32 %v532, %v539
      %v579 = vmul.f32 %v294, %v539
      %v580 = vmul.f32 %v295, %v539
      %v581 = vmul.f32 %v533, %v539
      %v582 = vmul.f32 %v296, %v539
      %v583 = vmul.f32 %v297, %v539
      %v584 = vmul.f32 %v534, %v539
      %v585 = vmul.f32 %v298, %v539
      %v586 = vmul.f32 %v299, %v539
      %v587 = vmul.f32 %v535, %v539
      %vm636 = vcmask 1046528
      %v637 = vrot.slane %v540, 1
      %v638 = vrot.slane %v541, 1
      %v639 = vsel %vm636, %v637, %v638
      %v640 = vrot.slane %v542, 1
      %v641 = vsel %vm636, %v638, %v640
      %v642 = vrot.slane %v543, 1
      %v643 = vrot.slane %v544, 1
      %v644 = vsel %vm636, %v642, %v643
      %v645 = vrot.slane %v545, 1
      %v646 = vsel %vm636, %v643, %v645
      %v647 = vrot.slane %v546, 1
      %v648 = vrot.slane %v547, 1
      %v649 = vsel %vm636, %v647, %v648
      %v650 = vrot.slane %v548, 1
      %v651 = vsel %vm636, %v648, %v650
      %v652 = vrot.slane %v549, 1
      %v653 = vrot.slane %v550, 1
      %v654 = vsel %vm636, %v652, %v653
      %v655 = vrot.slane %v551, 1
      %v656 = vsel %vm636, %v653, %v655
      %v657 = vrot.slane %v552, 1
      %v658 = vrot.slane %v553, 1
      %v659 = vsel %vm636, %v657, %v658
      %v660 = vrot.slane %v554, 1
      %v661 = vsel %vm636, %v658, %v660
      %v662 = vrot.slane %v555, 1
      %v663 = vrot.slane %v556, 1
      %v664 = vsel %vm636, %v662, %v663
      %v665 = vrot.slane %v557, 1
      %v666 = vsel %vm636, %v663, %v665
      %v667 = vrot.slane %v558, 1
      %v668 = vrot.slane %v559, 1
      %v669 = vsel %vm636, %v667, %v668
      %v670 = vrot.slane %v560, 1
      %v671 = vsel %vm636, %v668, %v670
      %v672 = vrot.slane %v561, 1
      %v673 = vrot.slane %v562, 1
      %v674 = vsel %vm636, %v672, %v673
      %v675 = vrot.slane %v563, 1
      %v676 = vsel %vm636, %v673, %v675
      %v677 = vrot.slane %v564, 1
      %v678 = vrot.slane %v565, 1
      %v679 = vsel %vm636, %v677, %v678
      %v680 = vrot.slane %v566, 1
      %v681 = vsel %vm636, %v678, %v680
      %v682 = vrot.slane %v567, 1
      %v683 = vrot.slane %v568, 1
      %v684 = vsel %vm636, %v682, %v683
      %v685 = vrot.slane %v569, 1
      %v686 = vsel %vm636, %v683, %v685
      %v687 = vrot.slane %v570, 1
      %v688 = vrot.slane %v571, 1
      %v689 = vsel %vm636, %v687, %v688
      %v690 = vrot.slane %v572, 1
      %v691 = vsel %vm636, %v688, %v690
      %v692 = vrot.slane %v573, 1
      %v693 = vrot.slane %v574, 1
      %v694 = vsel %vm636, %v692, %v693
      %v695 = vrot.slane %v575, 1
      %v696 = vsel %vm636, %v693, %v695
      %v697 = vrot.slane %v576, 1
      %v698 = vrot.slane %v577, 1
      %v699 = vsel %vm636, %v697, %v698
      %v700 = vrot.slane %v578, 1
      %v701 = vsel %vm636, %v698, %v700
      %v702 = vrot.slane %v579, 1
      %v703 = vrot.slane %v580, 1
      %v704 = vsel %vm636, %v702, %v703
      %v705 = vrot.slane %v581, 1
      %v706 = vsel %vm636, %v703, %v705
      %v707 = vrot.slane %v582, 1
      %v708 = vrot.slane %v583, 1
      %v709 = vsel %vm636, %v707, %v708
      %v710 = vrot.slane %v584, 1
      %v711 = vsel %vm636, %v708, %v710
      %v712 = vrot.slane %v585, 1
      %v713 = vrot.slane %v586, 1
      %v714 = vsel %vm636, %v712, %v713
      %v715 = vrot.slane %v587, 1
      %v716 = vsel %vm636, %v713, %v715
      %v749 = vadd.f32 %v470, %v639
      %v750 = vadd.f32 %v471, %v641
      %v751 = vadd.f32 %v472, %v644
      %v752 = vadd.f32 %v473, %v646
      %v753 = vadd.f32 %v474, %v649
      %v754 = vadd.f32 %v475, %v651
      %v755 = vadd.f32 %v476, %v654
      %v756 = vadd.f32 %v477, %v656
      %v757 = vadd.f32 %v478, %v659
      %v758 = vadd.f32 %v479, %v661
      %v759 = vadd.f32 %v480, %v664
      %v760 = vadd.f32 %v481, %v666
      %v761 = vadd.f32 %v482, %v669
      %v762 = vadd.f32 %v483, %v671
      %v763 = vadd.f32 %v484, %v674
      %v764 = vadd.f32 %v485, %v676
      %v765 = vadd.f32 %v486, %v679
      %v766 = vadd.f32 %v487, %v681
      %v767 = vadd.f32 %v488, %v684
      %v768 = vadd.f32 %v489, %v686
      %v769 = vadd.f32 %v490, %v689
      %v770 = vadd.f32 %v491, %v691
      %v771 = vadd.f32 %v492, %v694
      %v772 = vadd.f32 %v493, %v696
      %v773 = vadd.f32 %v494, %v699
      %v774 = vadd.f32 %v495, %v701
      %v775 = vadd.f32 %v496, %v704
      %v776 = vadd.f32 %v497, %v706
      %v777 = vadd.f32 %v498, %v709
      %v778 = vadd.f32 %v499, %v711
      %v779 = vadd.f32 %v500, %v714
      %v780 = vadd.f32 %v501, %v716
      %v781 = vld [vmem:[%s1 + $0x4] sm:$0x1]
      %v782 = vperm.slane %v781, 0
      %v783 = vmul.f32 %v270, %v782
      %v784 = vmul.f32 %v271, %v782
      %v785 = vmul.f32 %v521, %v782
      %v786 = vmul.f32 %v272, %v782
      %v787 = vmul.f32 %v273, %v782
      %v788 = vmul.f32 %v522, %v782
      %v789 = vmul.f32 %v274, %v782
      %v790 = vmul.f32 %v275, %v782
      %v791 = vmul.f32 %v523, %v782
      %v792 = vmul.f32 %v276, %v782
      %v793 = vmul.f32 %v277, %v782
      %v794 = vmul.f32 %v524, %v782
      %v795 = vmul.f32 %v278, %v782
      %v796 = vmul.f32 %v279, %v782
      %v797 = vmul.f32 %v525, %v782
      %v798 = vmul.f32 %v280, %v782
      %v799 = vmul.f32 %v281, %v782
      %v800 = vmul.f32 %v526, %v782
      %v801 = vmul.f32 %v282, %v782
      %v802 = vmul.f32 %v283, %v782
      %v803 = vmul.f32 %v527, %v782
      %v804 = vmul.f32 %v284, %v782
      %v805 = vmul.f32 %v285, %v782
      %v806 = vmul.f32 %v528, %v782
      %v807 = vmul.f32 %v286, %v782
      %v808 = vmul.f32 %v287, %v782
      %v809 = vmul.f32 %v529, %v782
      %v810 = vmul.f32 %v288, %v782
      %v811 = vmul.f32 %v289, %v782
      %v812 = vmul.f32 %v530, %v782
      %v813 = vmul.f32 %v290, %v782
      %v814 = vmul.f32 %v291, %v782
      %v815 = vmul.f32 %v531, %v782
      %v816 = vmul.f32 %v292, %v782
      %v817 = vmul.f32 %v293, %v782
      %v818 = vmul.f32 %v532, %v782
      %v819 = vmul.f32 %v294, %v782
      %v820 = vmul.f32 %v295, %v782
      %v821 = vmul.f32 %v533, %v782
      %v822 = vmul.f32 %v296, %v782
      %v823 = vmul.f32 %v297, %v782
      %v824 = vmul.f32 %v534, %v782
      %v825 = vmul.f32 %v298, %v782
      %v826 = vmul.f32 %v299, %v782
      %v827 = vmul.f32 %v535, %v782
      %v828 = vmul.f32 %v300, %v782
      %v829 = vmul.f32 %v301, %v782
      %v830 = vmul.f32 %v536, %v782
      %v879 = vrot.slane %v783, 1
      %v880 = vrot.slane %v784, 1
      %v881 = vsel %vm636, %v879, %v880
      %v882 = vrot.slane %v785, 1
      %v883 = vsel %vm636, %v880, %v882
      %v884 = vrot.slane %v786, 1
      %v885 = vrot.slane %v787, 1
      %v886 = vsel %vm636, %v884, %v885
      %v887 = vrot.slane %v788, 1
      %v888 = vsel %vm636, %v885, %v887
      %v889 = vrot.slane %v789, 1
      %v890 = vrot.slane %v790, 1
      %v891 = vsel %vm636, %v889, %v890
      %v892 = vrot.slane %v791, 1
      %v893 = vsel %vm636, %v890, %v892
      %v894 = vrot.slane %v792, 1
      %v895 = vrot.slane %v793, 1
      %v896 = vsel %vm636, %v894, %v895
      %v897 = vrot.slane %v794, 1
      %v898 = vsel %vm636, %v895, %v897
      %v899 = vrot.slane %v795, 1
      %v900 = vrot.slane %v796, 1
      %v901 = vsel %vm636, %v899, %v900
      %v902 = vrot.slane %v797, 1
      %v903 = vsel %vm636, %v900, %v902
      %v904 = vrot.slane %v798, 1
      %v905 = vrot.slane %v799, 1
      %v906 = vsel %vm636, %v904, %v905
      %v907 = vrot.slane %v800, 1
      %v908 = vsel %vm636, %v905, %v907
      %v909 = vrot.slane %v801, 1
      %v910 = vrot.slane %v802, 1
      %v911 = vsel %vm636, %v909, %v910
      %v912 = vrot.slane %v803, 1
      %v913 = vsel %vm636, %v910, %v912
      %v914 = vrot.slane %v804, 1
      %v915 = vrot.slane %v805, 1
      %v916 = vsel %vm636, %v914, %v915
      %v917 = vrot.slane %v806, 1
      %v918 = vsel %vm636, %v915, %v917
      %v919 = vrot.slane %v807, 1
      %v920 = vrot.slane %v808, 1
      %v921 = vsel %vm636, %v919, %v920
      %v922 = vrot.slane %v809, 1
      %v923 = vsel %vm636, %v920, %v922
      %v924 = vrot.slane %v810, 1
      %v925 = vrot.slane %v811, 1
      %v926 = vsel %vm636, %v924, %v925
      %v927 = vrot.slane %v812, 1
      %v928 = vsel %vm636, %v925, %v927
      %v929 = vrot.slane %v813, 1
      %v930 = vrot.slane %v814, 1
      %v931 = vsel %vm636, %v929, %v930
      %v932 = vrot.slane %v815, 1
      %v933 = vsel %vm636, %v930, %v932
      %v934 = vrot.slane %v816, 1
      %v935 = vrot.slane %v817, 1
      %v936 = vsel %vm636, %v934, %v935
      %v937 = vrot.slane %v818, 1
      %v938 = vsel %vm636, %v935, %v937
      %v939 = vrot.slane %v819, 1
      %v940 = vrot.slane %v820, 1
      %v941 = vsel %vm636, %v939, %v940
      %v942 = vrot.slane %v821, 1
      %v943 = vsel %vm636, %v940, %v942
      %v944 = vrot.slane %v822, 1
      %v945 = vrot.slane %v823, 1
      %v946 = vsel %vm636, %v944, %v945
      %v947 = vrot.slane %v824, 1
      %v948 = vsel %vm636, %v945, %v947
      %v949 = vrot.slane %v825, 1
      %v950 = vrot.slane %v826, 1
      %v951 = vsel %vm636, %v949, %v950
      %v952 = vrot.slane %v827, 1
      %v953 = vsel %vm636, %v950, %v952
      %v954 = vrot.slane %v828, 1
      %v955 = vrot.slane %v829, 1
      %v956 = vsel %vm636, %v954, %v955
      %v957 = vrot.slane %v830, 1
      %v958 = vsel %vm636, %v955, %v957
      %v991 = vadd.f32 %v749, %v881
      %v992 = vadd.f32 %v750, %v883
      %v993 = vadd.f32 %v751, %v886
      %v994 = vadd.f32 %v752, %v888
      %v995 = vadd.f32 %v753, %v891
      %v996 = vadd.f32 %v754, %v893
      %v997 = vadd.f32 %v755, %v896
      %v998 = vadd.f32 %v756, %v898
      %v999 = vadd.f32 %v757, %v901
      %v1000 = vadd.f32 %v758, %v903
      %v1001 = vadd.f32 %v759, %v906
      %v1002 = vadd.f32 %v760, %v908
      %v1003 = vadd.f32 %v761, %v911
      %v1004 = vadd.f32 %v762, %v913
      %v1005 = vadd.f32 %v763, %v916
      %v1006 = vadd.f32 %v764, %v918
      %v1007 = vadd.f32 %v765, %v921
      %v1008 = vadd.f32 %v766, %v923
      %v1009 = vadd.f32 %v767, %v926
      %v1010 = vadd.f32 %v768, %v928
      %v1011 = vadd.f32 %v769, %v931
      %v1012 = vadd.f32 %v770, %v933
      %v1013 = vadd.f32 %v771, %v936
      %v1014 = vadd.f32 %v772, %v938
      %v1015 = vadd.f32 %v773, %v941
      %v1016 = vadd.f32 %v774, %v943
      %v1017 = vadd.f32 %v775, %v946
      %v1018 = vadd.f32 %v776, %v948
      %v1019 = vadd.f32 %v777, %v951
      %v1020 = vadd.f32 %v778, %v953
      %v1021 = vadd.f32 %v779, %v956
      %v1022 = vadd.f32 %v780, %v958
      %v1023 = vld [vmem:[%s1 + $0x7] sm:$0x1]
      %v1024 = vperm.slane %v1023, 0
      %v1025 = vmul.f32 %v272, %v1024
      %v1026 = vmul.f32 %v273, %v1024
      %v1027 = vmul.f32 %v522, %v1024
      %v1028 = vmul.f32 %v274, %v1024
      %v1029 = vmul.f32 %v275, %v1024
      %v1030 = vmul.f32 %v523, %v1024
      %v1031 = vmul.f32 %v276, %v1024
      %v1032 = vmul.f32 %v277, %v1024
      %v1033 = vmul.f32 %v524, %v1024
      %v1034 = vmul.f32 %v278, %v1024
      %v1035 = vmul.f32 %v279, %v1024
      %v1036 = vmul.f32 %v525, %v1024
      %v1037 = vmul.f32 %v280, %v1024
      %v1038 = vmul.f32 %v281, %v1024
      %v1039 = vmul.f32 %v526, %v1024
      %v1040 = vmul.f32 %v282, %v1024
      %v1041 = vmul.f32 %v283, %v1024
      %v1042 = vmul.f32 %v527, %v1024
      %v1043 = vmul.f32 %v284, %v1024
      %v1044 = vmul.f32 %v285, %v1024
      %v1045 = vmul.f32 %v528, %v1024
      %v1046 = vmul.f32 %v286, %v1024
      %v1047 = vmul.f32 %v287, %v1024
      %v1048 = vmul.f32 %v529, %v1024
      %v1049 = vmul.f32 %v288, %v1024
      %v1050 = vmul.f32 %v289, %v1024
      %v1051 = vmul.f32 %v530, %v1024
      %v1052 = vmul.f32 %v290, %v1024
      %v1053 = vmul.f32 %v291, %v1024
      %v1054 = vmul.f32 %v531, %v1024
      %v1055 = vmul.f32 %v292, %v1024
      %v1056 = vmul.f32 %v293, %v1024
      %v1057 = vmul.f32 %v532, %v1024
      %v1058 = vmul.f32 %v294, %v1024
      %v1059 = vmul.f32 %v295, %v1024
      %v1060 = vmul.f32 %v533, %v1024
      %v1061 = vmul.f32 %v296, %v1024
      %v1062 = vmul.f32 %v297, %v1024
      %v1063 = vmul.f32 %v534, %v1024
      %v1064 = vmul.f32 %v298, %v1024
      %v1065 = vmul.f32 %v299, %v1024
      %v1066 = vmul.f32 %v535, %v1024
      %v1067 = vmul.f32 %v300, %v1024
      %v1068 = vmul.f32 %v301, %v1024
      %v1069 = vmul.f32 %v536, %v1024
      %v1070 = vmul.f32 %v302, %v1024
      %v1071 = vmul.f32 %v303, %v1024
      %v1072 = vmul.f32 %v537, %v1024
      %v1121 = vrot.slane %v1025, 1
      %v1122 = vrot.slane %v1026, 1
      %v1123 = vsel %vm636, %v1121, %v1122
      %v1124 = vrot.slane %v1027, 1
      %v1125 = vsel %vm636, %v1122, %v1124
      %v1126 = vrot.slane %v1028, 1
      %v1127 = vrot.slane %v1029, 1
      %v1128 = vsel %vm636, %v1126, %v1127
      %v1129 = vrot.slane %v1030, 1
      %v1130 = vsel %vm636, %v1127, %v1129
      %v1131 = vrot.slane %v1031, 1
      %v1132 = vrot.slane %v1032, 1
      %v1133 = vsel %vm636, %v1131, %v1132
      %v1134 = vrot.slane %v1033, 1
      %v1135 = vsel %vm636, %v1132, %v1134
      %v1136 = vrot.slane %v1034, 1
      %v1137 = vrot.slane %v1035, 1
      %v1138 = vsel %vm636, %v1136, %v1137
      %v1139 = vrot.slane %v1036, 1
      %v1140 = vsel %vm636, %v1137, %v1139
      %v1141 = vrot.slane %v1037, 1
      %v1142 = vrot.slane %v1038, 1
      %v1143 = vsel %vm636, %v1141, %v1142
      %v1144 = vrot.slane %v1039, 1
      %v1145 = vsel %vm636, %v1142, %v1144
      %v1146 = vrot.slane %v1040, 1
      %v1147 = vrot.slane %v1041, 1
      %v1148 = vsel %vm636, %v1146, %v1147
      %v1149 = vrot.slane %v1042, 1
      %v1150 = vsel %vm636, %v1147, %v1149
      %v1151 = vrot.slane %v1043, 1
      %v1152 = vrot.slane %v1044, 1
      %v1153 = vsel %vm636, %v1151, %v1152
      %v1154 = vrot.slane %v1045, 1
      %v1155 = vsel %vm636, %v1152, %v1154
      %v1156 = vrot.slane %v1046, 1
      %v1157 = vrot.slane %v1047, 1
      %v1158 = vsel %vm636, %v1156, %v1157
      %v1159 = vrot.slane %v1048, 1
      %v1160 = vsel %vm636, %v1157, %v1159
      %v1161 = vrot.slane %v1049, 1
      %v1162 = vrot.slane %v1050, 1
      %v1163 = vsel %vm636, %v1161, %v1162
      %v1164 = vrot.slane %v1051, 1
      %v1165 = vsel %vm636, %v1162, %v1164
      %v1166 = vrot.slane %v1052, 1
      %v1167 = vrot.slane %v1053, 1
      %v1168 = vsel %vm636, %v1166, %v1167
      %v1169 = vrot.slane %v1054, 1
      %v1170 = vsel %vm636, %v1167, %v1169
      %v1171 = vrot.slane %v1055, 1
      %v1172 = vrot.slane %v1056, 1
      %v1173 = vsel %vm636, %v1171, %v1172
      %v1174 = vrot.slane %v1057, 1
      %v1175 = vsel %vm636, %v1172, %v1174
      %v1176 = vrot.slane %v1058, 1
      %v1177 = vrot.slane %v1059, 1
      %v1178 = vsel %vm636, %v1176, %v1177
      %v1179 = vrot.slane %v1060, 1
      %v1180 = vsel %vm636, %v1177, %v1179
      %v1181 = vrot.slane %v1061, 1
      %v1182 = vrot.slane %v1062, 1
      %v1183 = vsel %vm636, %v1181, %v1182
      %v1184 = vrot.slane %v1063, 1
      %v1185 = vsel %vm636, %v1182, %v1184
      %v1186 = vrot.slane %v1064, 1
      %v1187 = vrot.slane %v1065, 1
      %v1188 = vsel %vm636, %v1186, %v1187
      %v1189 = vrot.slane %v1066, 1
      %v1190 = vsel %vm636, %v1187, %v1189
      %v1191 = vrot.slane %v1067, 1
      %v1192 = vrot.slane %v1068, 1
      %v1193 = vsel %vm636, %v1191, %v1192
      %v1194 = vrot.slane %v1069, 1
      %v1195 = vsel %vm636, %v1192, %v1194
      %v1196 = vrot.slane %v1070, 1
      %v1197 = vrot.slane %v1071, 1
      %v1198 = vsel %vm636, %v1196, %v1197
      %v1199 = vrot.slane %v1072, 1
      %v1200 = vsel %vm636, %v1197, %v1199
      %v1233 = vadd.f32 %v991, %v1123
      %v1234 = vadd.f32 %v992, %v1125
      %v1235 = vadd.f32 %v993, %v1128
      %v1236 = vadd.f32 %v994, %v1130
      %v1237 = vadd.f32 %v995, %v1133
      %v1238 = vadd.f32 %v996, %v1135
      %v1239 = vadd.f32 %v997, %v1138
      %v1240 = vadd.f32 %v998, %v1140
      %v1241 = vadd.f32 %v999, %v1143
      %v1242 = vadd.f32 %v1000, %v1145
      %v1243 = vadd.f32 %v1001, %v1148
      %v1244 = vadd.f32 %v1002, %v1150
      %v1245 = vadd.f32 %v1003, %v1153
      %v1246 = vadd.f32 %v1004, %v1155
      %v1247 = vadd.f32 %v1005, %v1158
      %v1248 = vadd.f32 %v1006, %v1160
      %v1249 = vadd.f32 %v1007, %v1163
      %v1250 = vadd.f32 %v1008, %v1165
      %v1251 = vadd.f32 %v1009, %v1168
      %v1252 = vadd.f32 %v1010, %v1170
      %v1253 = vadd.f32 %v1011, %v1173
      %v1254 = vadd.f32 %v1012, %v1175
      %v1255 = vadd.f32 %v1013, %v1178
      %v1256 = vadd.f32 %v1014, %v1180
      %v1257 = vadd.f32 %v1015, %v1183
      %v1258 = vadd.f32 %v1016, %v1185
      %v1259 = vadd.f32 %v1017, %v1188
      %v1260 = vadd.f32 %v1018, %v1190
      %v1261 = vadd.f32 %v1019, %v1193
      %v1262 = vadd.f32 %v1020, %v1195
      %v1263 = vadd.f32 %v1021, %v1198
      %v1264 = vadd.f32 %v1022, %v1200
      %v1265 = vld [vmem:[%s223] sm:$0xe]
      %v1266 = vld [vmem:[%s223 + $0xc] sm:$0xe]
      %v1267 = vld [vmem:[%s223 + $0x18] sm:$0xe]
      %v1268 = vld [vmem:[%s223 + $0x24] sm:$0xe]
      %v1269 = vld [vmem:[%s223 + $0x30] sm:$0xe]
      %v1270 = vld [vmem:[%s223 + $0x3c] sm:$0xe]
      %v1271 = vld [vmem:[%s223 + $0x48] sm:$0xe]
      %v1272 = vld [vmem:[%s223 + $0x54] sm:$0xe]
      %v1273 = vld [vmem:[%s223 + $0x60] sm:$0xe]
      %v1274 = vld [vmem:[%s223 + $0x6c] sm:$0xe]
      %v1275 = vld [vmem:[%s223 + $0x78] sm:$0xe]
      %v1276 = vld [vmem:[%s223 + $0x84] sm:$0xe]
      %v1277 = vld [vmem:[%s223 + $0x90] sm:$0xe]
      %v1278 = vld [vmem:[%s223 + $0x9c] sm:$0xe]
      %v1279 = vld [vmem:[%s223 + $0xa8] sm:$0xe]
      %v1280 = vld [vmem:[%s223 + $0xb4] sm:$0xe]
      %v1281 = vld [vmem:[%s223 + $0xc0] sm:$0xe]
      %v1282 = vld [vmem:[%s223 + $0xcc] sm:$0xe]
      %v1283 = vunpack.c.l.bf16 %v1265
      %v1284 = vunpack.c.l.bf16 %v1266
      %v1285 = vunpack.c.l.bf16 %v1267
      %v1286 = vunpack.c.l.bf16 %v1268
      %v1287 = vunpack.c.l.bf16 %v1269
      %v1288 = vunpack.c.l.bf16 %v1270
      %v1289 = vunpack.c.l.bf16 %v1271
      %v1290 = vunpack.c.l.bf16 %v1272
      %v1291 = vunpack.c.l.bf16 %v1273
      %v1292 = vunpack.c.l.bf16 %v1274
      %v1293 = vunpack.c.l.bf16 %v1275
      %v1294 = vunpack.c.l.bf16 %v1276
      %v1295 = vunpack.c.l.bf16 %v1277
      %v1296 = vunpack.c.l.bf16 %v1278
      %v1297 = vunpack.c.l.bf16 %v1279
      %v1298 = vunpack.c.l.bf16 %v1280
      %v1299 = vunpack.c.l.bf16 %v1281
      %v1300 = vunpack.c.l.bf16 %v1282
      %v1301 = vld [vmem:[%s1 + $0x2] sm:$0x1]
      %v1302 = vperm.slane %v1301, 0
      %v1303 = vmul.f32 %v1283, %v1302
      %v1304 = vmul.f32 %v269, %v1302
      %v1305 = vmul.f32 %v520, %v1302
      %v1306 = vmul.f32 %v1284, %v1302
      %v1307 = vmul.f32 %v271, %v1302
      %v1308 = vmul.f32 %v521, %v1302
      %v1309 = vmul.f32 %v1285, %v1302
      %v1310 = vmul.f32 %v273, %v1302
      %v1311 = vmul.f32 %v522, %v1302
      %v1312 = vmul.f32 %v1286, %v1302
      %v1313 = vmul.f32 %v275, %v1302
      %v1314 = vmul.f32 %v523, %v1302
      %v1315 = vmul.f32 %v1287, %v1302
      %v1316 = vmul.f32 %v277, %v1302
      %v1317 = vmul.f32 %v524, %v1302
      %v1318 = vmul.f32 %v1288, %v1302
      %v1319 = vmul.f32 %v279, %v1302
      %v1320 = vmul.f32 %v525, %v1302
      %v1321 = vmul.f32 %v1289, %v1302
      %v1322 = vmul.f32 %v281, %v1302
      %v1323 = vmul.f32 %v526, %v1302
      %v1324 = vmul.f32 %v1290, %v1302
      %v1325 = vmul.f32 %v283, %v1302
      %v1326 = vmul.f32 %v527, %v1302
      %v1327 = vmul.f32 %v1291, %v1302
      %v1328 = vmul.f32 %v285, %v1302
      %v1329 = vmul.f32 %v528, %v1302
      %v1330 = vmul.f32 %v1292, %v1302
      %v1331 = vmul.f32 %v287, %v1302
      %v1332 = vmul.f32 %v529, %v1302
      %v1333 = vmul.f32 %v1293, %v1302
      %v1334 = vmul.f32 %v289, %v1302
      %v1335 = vmul.f32 %v530, %v1302
      %v1336 = vmul.f32 %v1294, %v1302
      %v1337 = vmul.f32 %v291, %v1302
      %v1338 = vmul.f32 %v531, %v1302
      %v1339 = vmul.f32 %v1295, %v1302
      %v1340 = vmul.f32 %v293, %v1302
      %v1341 = vmul.f32 %v532, %v1302
      %v1342 = vmul.f32 %v1296, %v1302
      %v1343 = vmul.f32 %v295, %v1302
      %v1344 = vmul.f32 %v533, %v1302
      %v1345 = vmul.f32 %v1297, %v1302
      %v1346 = vmul.f32 %v297, %v1302
      %v1347 = vmul.f32 %v534, %v1302
      %v1348 = vmul.f32 %v1298, %v1302
      %v1349 = vmul.f32 %v299, %v1302
      %v1350 = vmul.f32 %v535, %v1302
      %vm1399 = vcmask 1045504
      %v1400 = vrot.slane %v1303, 2
      %v1401 = vrot.slane %v1304, 2
      %v1402 = vsel %vm1399, %v1400, %v1401
      %v1403 = vrot.slane %v1305, 2
      %v1404 = vsel %vm1399, %v1401, %v1403
      %v1405 = vrot.slane %v1306, 2
      %v1406 = vrot.slane %v1307, 2
      %v1407 = vsel %vm1399, %v1405, %v1406
      %v1408 = vrot.slane %v1308, 2
      %v1409 = vsel %vm1399, %v1406, %v1408
      %v1410 = vrot.slane %v1309, 2
      %v1411 = vrot.slane %v1310, 2
      %v1412 = vsel %vm1399, %v1410, %v1411
      %v1413 = vrot.slane %v1311, 2
      %v1414 = vsel %vm1399, %v1411, %v1413
      %v1415 = vrot.slane %v1312, 2
      %v1416 = vrot.slane %v1313, 2
      %v1417 = vsel %vm1399, %v1415, %v1416
      %v1418 = vrot.slane %v1314, 2
      %v1419 = vsel %vm1399, %v1416, %v1418
      %v1420 = vrot.slane %v1315, 2
      %v1421 = vrot.slane %v1316, 2
      %v1422 = vsel %vm1399, %v1420, %v1421
      %v1423 = vrot.slane %v1317, 2
      %v1424 = vsel %vm1399, %v1421, %v1423
      %v1425 = vrot.slane %v1318, 2
      %v1426 = vrot.slane %v1319, 2
      %v1427 = vsel %vm1399, %v1425, %v1426
      %v1428 = vrot.slane %v1320, 2
      %v1429 = vsel %vm1399, %v1426, %v1428
      %v1430 = vrot.slane %v1321, 2
      %v1431 = vrot.slane %v1322, 2
      %v1432 = vsel %vm1399, %v1430, %v1431
      %v1433 = vrot.slane %v1323, 2
      %v1434 = vsel %vm1399, %v1431, %v1433
      %v1435 = vrot.slane %v1324, 2
      %v1436 = vrot.slane %v1325, 2
      %v1437 = vsel %vm1399, %v1435, %v1436
      %v1438 = vrot.slane %v1326, 2
      %v1439 = vsel %vm1399, %v1436, %v1438
      %v1440 = vrot.slane %v1327, 2
      %v1441 = vrot.slane %v1328, 2
      %v1442 = vsel %vm1399, %v1440, %v1441
      %v1443 = vrot.slane %v1329, 2
      %v1444 = vsel %vm1399, %v1441, %v1443
      %v1445 = vrot.slane %v1330, 2
      %v1446 = vrot.slane %v1331, 2
      %v1447 = vsel %vm1399, %v1445, %v1446
      %v1448 = vrot.slane %v1332, 2
      %v1449 = vsel %vm1399, %v1446, %v1448
      %v1450 = vrot.slane %v1333, 2
      %v1451 = vrot.slane %v1334, 2
      %v1452 = vsel %vm1399, %v1450, %v1451
      %v1453 = vrot.slane %v1335, 2
      %v1454 = vsel %vm1399, %v1451, %v1453
      %v1455 = vrot.slane %v1336, 2
      %v1456 = vrot.slane %v1337, 2
      %v1457 = vsel %vm1399, %v1455, %v1456
      %v1458 = vrot.slane %v1338, 2
      %v1459 = vsel %vm1399, %v1456, %v1458
      %v1460 = vrot.slane %v1339, 2
      %v1461 = vrot.slane %v1340, 2
      %v1462 = vsel %vm1399, %v1460, %v1461
      %v1463 = vrot.slane %v1341, 2
      %v1464 = vsel %vm1399, %v1461, %v1463
      %v1465 = vrot.slane %v1342, 2
      %v1466 = vrot.slane %v1343, 2
      %v1467 = vsel %vm1399, %v1465, %v1466
      %v1468 = vrot.slane %v1344, 2
      %v1469 = vsel %vm1399, %v1466, %v1468
      %v1470 = vrot.slane %v1345, 2
      %v1471 = vrot.slane %v1346, 2
      %v1472 = vsel %vm1399, %v1470, %v1471
      %v1473 = vrot.slane %v1347, 2
      %v1474 = vsel %vm1399, %v1471, %v1473
      %v1475 = vrot.slane %v1348, 2
      %v1476 = vrot.slane %v1349, 2
      %v1477 = vsel %vm1399, %v1475, %v1476
      %v1478 = vrot.slane %v1350, 2
      %v1479 = vsel %vm1399, %v1476, %v1478
      %v1512 = vadd.f32 %v1233, %v1402
      %v1513 = vadd.f32 %v1234, %v1404
      %v1514 = vadd.f32 %v1235, %v1407
      %v1515 = vadd.f32 %v1236, %v1409
      %v1516 = vadd.f32 %v1237, %v1412
      %v1517 = vadd.f32 %v1238, %v1414
      %v1518 = vadd.f32 %v1239, %v1417
      %v1519 = vadd.f32 %v1240, %v1419
      %v1520 = vadd.f32 %v1241, %v1422
      %v1521 = vadd.f32 %v1242, %v1424
      %v1522 = vadd.f32 %v1243, %v1427
      %v1523 = vadd.f32 %v1244, %v1429
      %v1524 = vadd.f32 %v1245, %v1432
      %v1525 = vadd.f32 %v1246, %v1434
      %v1526 = vadd.f32 %v1247, %v1437
      %v1527 = vadd.f32 %v1248, %v1439
      %v1528 = vadd.f32 %v1249, %v1442
      %v1529 = vadd.f32 %v1250, %v1444
      %v1530 = vadd.f32 %v1251, %v1447
      %v1531 = vadd.f32 %v1252, %v1449
      %v1532 = vadd.f32 %v1253, %v1452
      %v1533 = vadd.f32 %v1254, %v1454
      %v1534 = vadd.f32 %v1255, %v1457
      %v1535 = vadd.f32 %v1256, %v1459
      %v1536 = vadd.f32 %v1257, %v1462
      %v1537 = vadd.f32 %v1258, %v1464
      %v1538 = vadd.f32 %v1259, %v1467
      %v1539 = vadd.f32 %v1260, %v1469
      %v1540 = vadd.f32 %v1261, %v1472
      %v1541 = vadd.f32 %v1262, %v1474
      %v1542 = vadd.f32 %v1263, %v1477
      %v1543 = vadd.f32 %v1264, %v1479
      %v1544 = vld [vmem:[%s1 + $0x5] sm:$0x1]
      %v1545 = vperm.slane %v1544, 0
      %v1546 = vmul.f32 %v1284, %v1545
      %v1547 = vmul.f32 %v271, %v1545
      %v1548 = vmul.f32 %v521, %v1545
      %v1549 = vmul.f32 %v1285, %v1545
      %v1550 = vmul.f32 %v273, %v1545
      %v1551 = vmul.f32 %v522, %v1545
      %v1552 = vmul.f32 %v1286, %v1545
      %v1553 = vmul.f32 %v275, %v1545
      %v1554 = vmul.f32 %v523, %v1545
      %v1555 = vmul.f32 %v1287, %v1545
      %v1556 = vmul.f32 %v277, %v1545
      %v1557 = vmul.f32 %v524, %v1545
      %v1558 = vmul.f32 %v1288, %v1545
      %v1559 = vmul.f32 %v279, %v1545
      %v1560 = vmul.f32 %v525, %v1545
      %v1561 = vmul.f32 %v1289, %v1545
      %v1562 = vmul.f32 %v281, %v1545
      %v1563 = vmul.f32 %v526, %v1545
      %v1564 = vmul.f32 %v1290, %v1545
      %v1565 = vmul.f32 %v283, %v1545
      %v1566 = vmul.f32 %v527, %v1545
      %v1567 = vmul.f32 %v1291, %v1545
      %v1568 = vmul.f32 %v285, %v1545
      %v1569 = vmul.f32 %v528, %v1545
      %v1570 = vmul.f32 %v1292, %v1545
      %v1571 = vmul.f32 %v287, %v1545
      %v1572 = vmul.f32 %v529, %v1545
      %v1573 = vmul.f32 %v1293, %v1545
      %v1574 = vmul.f32 %v289, %v1545
      %v1575 = vmul.f32 %v530, %v1545
      %v1576 = vmul.f32 %v1294, %v1545
      %v1577 = vmul.f32 %v291, %v1545
      %v1578 = vmul.f32 %v531, %v1545
      %v1579 = vmul.f32 %v1295, %v1545
      %v1580 = vmul.f32 %v293, %v1545
      %v1581 = vmul.f32 %v532, %v1545
      %v1582 = vmul.f32 %v1296, %v1545
      %v1583 = vmul.f32 %v295, %v1545
      %v1584 = vmul.f32 %v533, %v1545
      %v1585 = vmul.f32 %v1297, %v1545
      %v1586 = vmul.f32 %v297, %v1545
      %v1587 = vmul.f32 %v534, %v1545
      %v1588 = vmul.f32 %v1298, %v1545
      %v1589 = vmul.f32 %v299, %v1545
      %v1590 = vmul.f32 %v535, %v1545
      %v1591 = vmul.f32 %v1299, %v1545
      %v1592 = vmul.f32 %v301, %v1545
      %v1593 = vmul.f32 %v536, %v1545
      %v1642 = vrot.slane %v1546, 2
      %v1643 = vrot.slane %v1547, 2
      %v1644 = vsel %vm1399, %v1642, %v1643
      %v1645 = vrot.slane %v1548, 2
      %v1646 = vsel %vm1399, %v1643, %v1645
      %v1647 = vrot.slane %v1549, 2
      %v1648 = vrot.slane %v1550, 2
      %v1649 = vsel %vm1399, %v1647, %v1648
      %v1650 = vrot.slane %v1551, 2
      %v1651 = vsel %vm1399, %v1648, %v1650
      %v1652 = vrot.slane %v1552, 2
      %v1653 = vrot.slane %v1553, 2
      %v1654 = vsel %vm1399, %v1652, %v1653
      %v1655 = vrot.slane %v1554, 2
      %v1656 = vsel %vm1399, %v1653, %v1655
      %v1657 = vrot.slane %v1555, 2
      %v1658 = vrot.slane %v1556, 2
      %v1659 = vsel %vm1399, %v1657, %v1658
      %v1660 = vrot.slane %v1557, 2
      %v1661 = vsel %vm1399, %v1658, %v1660
      %v1662 = vrot.slane %v1558, 2
      %v1663 = vrot.slane %v1559, 2
      %v1664 = vsel %vm1399, %v1662, %v1663
      %v1665 = vrot.slane %v1560, 2
      %v1666 = vsel %vm1399, %v1663, %v1665
      %v1667 = vrot.slane %v1561, 2
      %v1668 = vrot.slane %v1562, 2
      %v1669 = vsel %vm1399, %v1667, %v1668
      %v1670 = vrot.slane %v1563, 2
      %v1671 = vsel %vm1399, %v1668, %v1670
      %v1672 = vrot.slane %v1564, 2
      %v1673 = vrot.slane %v1565, 2
      %v1674 = vsel %vm1399, %v1672, %v1673
      %v1675 = vrot.slane %v1566, 2
      %v1676 = vsel %vm1399, %v1673, %v1675
      %v1677 = vrot.slane %v1567, 2
      %v1678 = vrot.slane %v1568, 2
      %v1679 = vsel %vm1399, %v1677, %v1678
      %v1680 = vrot.slane %v1569, 2
      %v1681 = vsel %vm1399, %v1678, %v1680
      %v1682 = vrot.slane %v1570, 2
      %v1683 = vrot.slane %v1571, 2
      %v1684 = vsel %vm1399, %v1682, %v1683
      %v1685 = vrot.slane %v1572, 2
      %v1686 = vsel %vm1399, %v1683, %v1685
      %v1687 = vrot.slane %v1573, 2
      %v1688 = vrot.slane %v1574, 2
      %v1689 = vsel %vm1399, %v1687, %v1688
      %v1690 = vrot.slane %v1575, 2
      %v1691 = vsel %vm1399, %v1688, %v1690
      %v1692 = vrot.slane %v1576, 2
      %v1693 = vrot.slane %v1577, 2
      %v1694 = vsel %vm1399, %v1692, %v1693
      %v1695 = vrot.slane %v1578, 2
      %v1696 = vsel %vm1399, %v1693, %v1695
      %v1697 = vrot.slane %v1579, 2
      %v1698 = vrot.slane %v1580, 2
      %v1699 = vsel %vm1399, %v1697, %v1698
      %v1700 = vrot.slane %v1581, 2
      %v1701 = vsel %vm1399, %v1698, %v1700
      %v1702 = vrot.slane %v1582, 2
      %v1703 = vrot.slane %v1583, 2
      %v1704 = vsel %vm1399, %v1702, %v1703
      %v1705 = vrot.slane %v1584, 2
      %v1706 = vsel %vm1399, %v1703, %v1705
      %v1707 = vrot.slane %v1585, 2
      %v1708 = vrot.slane %v1586, 2
      %v1709 = vsel %vm1399, %v1707, %v1708
      %v1710 = vrot.slane %v1587, 2
      %v1711 = vsel %vm1399, %v1708, %v1710
      %v1712 = vrot.slane %v1588, 2
      %v1713 = vrot.slane %v1589, 2
      %v1714 = vsel %vm1399, %v1712, %v1713
      %v1715 = vrot.slane %v1590, 2
      %v1716 = vsel %vm1399, %v1713, %v1715
      %v1717 = vrot.slane %v1591, 2
      %v1718 = vrot.slane %v1592, 2
      %v1719 = vsel %vm1399, %v1717, %v1718
      %v1720 = vrot.slane %v1593, 2
      %v1721 = vsel %vm1399, %v1718, %v1720
      %v1754 = vadd.f32 %v1512, %v1644
      %v1755 = vadd.f32 %v1513, %v1646
      %v1756 = vadd.f32 %v1514, %v1649
      %v1757 = vadd.f32 %v1515, %v1651
      %v1758 = vadd.f32 %v1516, %v1654
      %v1759 = vadd.f32 %v1517, %v1656
      %v1760 = vadd.f32 %v1518, %v1659
      %v1761 = vadd.f32 %v1519, %v1661
      %v1762 = vadd.f32 %v1520, %v1664
      %v1763 = vadd.f32 %v1521, %v1666
      %v1764 = vadd.f32 %v1522, %v1669
      %v1765 = vadd.f32 %v1523, %v1671
      %v1766 = vadd.f32 %v1524, %v1674
      %v1767 = vadd.f32 %v1525, %v1676
      %v1768 = vadd.f32 %v1526, %v1679
      %v1769 = vadd.f32 %v1527, %v1681
      %v1770 = vadd.f32 %v1528, %v1684
      %v1771 = vadd.f32 %v1529, %v1686
      %v1772 = vadd.f32 %v1530, %v1689
      %v1773 = vadd.f32 %v1531, %v1691
      %v1774 = vadd.f32 %v1532, %v1694
      %v1775 = vadd.f32 %v1533, %v1696
      %v1776 = vadd.f32 %v1534, %v1699
      %v1777 = vadd.f32 %v1535, %v1701
      %v1778 = vadd.f32 %v1536, %v1704
      %v1779 = vadd.f32 %v1537, %v1706
      %v1780 = vadd.f32 %v1538, %v1709
      %v1781 = vadd.f32 %v1539, %v1711
      %v1782 = vadd.f32 %v1540, %v1714
      %v1783 = vadd.f32 %v1541, %v1716
      %v1784 = vadd.f32 %v1542, %v1719
      %v1785 = vadd.f32 %v1543, %v1721
      %v1786 = vld [vmem:[%s1 + $0x8] sm:$0x1]
      %v1787 = vperm.slane %v1786, 0
      %v1788 = vmul.f32 %v1285, %v1787
      %v1789 = vmul.f32 %v273, %v1787
      %v1790 = vmul.f32 %v522, %v1787
      %v1791 = vmul.f32 %v1286, %v1787
      %v1792 = vmul.f32 %v275, %v1787
      %v1793 = vmul.f32 %v523, %v1787
      %v1794 = vmul.f32 %v1287, %v1787
      %v1795 = vmul.f32 %v277, %v1787
      %v1796 = vmul.f32 %v524, %v1787
      %v1797 = vmul.f32 %v1288, %v1787
      %v1798 = vmul.f32 %v279, %v1787
      %v1799 = vmul.f32 %v525, %v1787
      %v1800 = vmul.f32 %v1289, %v1787
      %v1801 = vmul.f32 %v281, %v1787
      %v1802 = vmul.f32 %v526, %v1787
      %v1803 = vmul.f32 %v1290, %v1787
      %v1804 = vmul.f32 %v283, %v1787
      %v1805 = vmul.f32 %v527, %v1787
      %v1806 = vmul.f32 %v1291, %v1787
      %v1807 = vmul.f32 %v285, %v1787
      %v1808 = vmul.f32 %v528, %v1787
      %v1809 = vmul.f32 %v1292, %v1787
      %v1810 = vmul.f32 %v287, %v1787
      %v1811 = vmul.f32 %v529, %v1787
      %v1812 = vmul.f32 %v1293, %v1787
      %v1813 = vmul.f32 %v289, %v1787
      %v1814 = vmul.f32 %v530, %v1787
      %v1815 = vmul.f32 %v1294, %v1787
      %v1816 = vmul.f32 %v291, %v1787
      %v1817 = vmul.f32 %v531, %v1787
      %v1818 = vmul.f32 %v1295, %v1787
      %v1819 = vmul.f32 %v293, %v1787
      %v1820 = vmul.f32 %v532, %v1787
      %v1821 = vmul.f32 %v1296, %v1787
      %v1822 = vmul.f32 %v295, %v1787
      %v1823 = vmul.f32 %v533, %v1787
      %v1824 = vmul.f32 %v1297, %v1787
      %v1825 = vmul.f32 %v297, %v1787
      %v1826 = vmul.f32 %v534, %v1787
      %v1827 = vmul.f32 %v1298, %v1787
      %v1828 = vmul.f32 %v299, %v1787
      %v1829 = vmul.f32 %v535, %v1787
      %v1830 = vmul.f32 %v1299, %v1787
      %v1831 = vmul.f32 %v301, %v1787
      %v1832 = vmul.f32 %v536, %v1787
      %v1833 = vmul.f32 %v1300, %v1787
      %v1834 = vmul.f32 %v303, %v1787
      %v1835 = vmul.f32 %v537, %v1787
      %v1884 = vrot.slane %v1788, 2
      %v1885 = vrot.slane %v1789, 2
      %v1886 = vsel %vm1399, %v1884, %v1885
      %v1887 = vrot.slane %v1790, 2
      %v1888 = vsel %vm1399, %v1885, %v1887
      %v1889 = vrot.slane %v1791, 2
      %v1890 = vrot.slane %v1792, 2
      %v1891 = vsel %vm1399, %v1889, %v1890
      %v1892 = vrot.slane %v1793, 2
      %v1893 = vsel %vm1399, %v1890, %v1892
      %v1894 = vrot.slane %v1794, 2
      %v1895 = vrot.slane %v1795, 2
      %v1896 = vsel %vm1399, %v1894, %v1895
      %v1897 = vrot.slane %v1796, 2
      %v1898 = vsel %vm1399, %v1895, %v1897
      %v1899 = vrot.slane %v1797, 2
      %v1900 = vrot.slane %v1798, 2
      %v1901 = vsel %vm1399, %v1899, %v1900
      %v1902 = vrot.slane %v1799, 2
      %v1903 = vsel %vm1399, %v1900, %v1902
      %v1904 = vrot.slane %v1800, 2
      %v1905 = vrot.slane %v1801, 2
      %v1906 = vsel %vm1399, %v1904, %v1905
      %v1907 = vrot.slane %v1802, 2
      %v1908 = vsel %vm1399, %v1905, %v1907
      %v1909 = vrot.slane %v1803, 2
      %v1910 = vrot.slane %v1804, 2
      %v1911 = vsel %vm1399, %v1909, %v1910
      %v1912 = vrot.slane %v1805, 2
      %v1913 = vsel %vm1399, %v1910, %v1912
      %v1914 = vrot.slane %v1806, 2
      %v1915 = vrot.slane %v1807, 2
      %v1916 = vsel %vm1399, %v1914, %v1915
      %v1917 = vrot.slane %v1808, 2
      %v1918 = vsel %vm1399, %v1915, %v1917
      %v1919 = vrot.slane %v1809, 2
      %v1920 = vrot.slane %v1810, 2
      %v1921 = vsel %vm1399, %v1919, %v1920
      %v1922 = vrot.slane %v1811, 2
      %v1923 = vsel %vm1399, %v1920, %v1922
      %v1924 = vrot.slane %v1812, 2
      %v1925 = vrot.slane %v1813, 2
      %v1926 = vsel %vm1399, %v1924, %v1925
      %v1927 = vrot.slane %v1814, 2
      %v1928 = vsel %vm1399, %v1925, %v1927
      %v1929 = vrot.slane %v1815, 2
      %v1930 = vrot.slane %v1816, 2
      %v1931 = vsel %vm1399, %v1929, %v1930
      %v1932 = vrot.slane %v1817, 2
      %v1933 = vsel %vm1399, %v1930, %v1932
      %v1934 = vrot.slane %v1818, 2
      %v1935 = vrot.slane %v1819, 2
      %v1936 = vsel %vm1399, %v1934, %v1935
      %v1937 = vrot.slane %v1820, 2
      %v1938 = vsel %vm1399, %v1935, %v1937
      %v1939 = vrot.slane %v1821, 2
      %v1940 = vrot.slane %v1822, 2
      %v1941 = vsel %vm1399, %v1939, %v1940
      %v1942 = vrot.slane %v1823, 2
      %v1943 = vsel %vm1399, %v1940, %v1942
      %v1944 = vrot.slane %v1824, 2
      %v1945 = vrot.slane %v1825, 2
      %v1946 = vsel %vm1399, %v1944, %v1945
      %v1947 = vrot.slane %v1826, 2
      %v1948 = vsel %vm1399, %v1945, %v1947
      %v1949 = vrot.slane %v1827, 2
      %v1950 = vrot.slane %v1828, 2
      %v1951 = vsel %vm1399, %v1949, %v1950
      %v1952 = vrot.slane %v1829, 2
      %v1953 = vsel %vm1399, %v1950, %v1952
      %v1954 = vrot.slane %v1830, 2
      %v1955 = vrot.slane %v1831, 2
      %v1956 = vsel %vm1399, %v1954, %v1955
      %v1957 = vrot.slane %v1832, 2
      %v1958 = vsel %vm1399, %v1955, %v1957
      %v1959 = vrot.slane %v1833, 2
      %v1960 = vrot.slane %v1834, 2
      %v1961 = vsel %vm1399, %v1959, %v1960
      %v1962 = vrot.slane %v1835, 2
      %v1963 = vsel %vm1399, %v1960, %v1962
      %v1996 = vadd.f32 %v1754, %v1886
      %v1997 = vadd.f32 %v1755, %v1888
      %v1998 = vadd.f32 %v1756, %v1891
      %v1999 = vadd.f32 %v1757, %v1893
      %v2000 = vadd.f32 %v1758, %v1896
      %v2001 = vadd.f32 %v1759, %v1898
      %v2002 = vadd.f32 %v1760, %v1901
      %v2003 = vadd.f32 %v1761, %v1903
      %v2004 = vadd.f32 %v1762, %v1906
      %v2005 = vadd.f32 %v1763, %v1908
      %v2006 = vadd.f32 %v1764, %v1911
      %v2007 = vadd.f32 %v1765, %v1913
      %v2008 = vadd.f32 %v1766, %v1916
      %v2009 = vadd.f32 %v1767, %v1918
      %v2010 = vadd.f32 %v1768, %v1921
      %v2011 = vadd.f32 %v1769, %v1923
      %v2012 = vadd.f32 %v1770, %v1926
      %v2013 = vadd.f32 %v1771, %v1928
      %v2014 = vadd.f32 %v1772, %v1931
      %v2015 = vadd.f32 %v1773, %v1933
      %v2016 = vadd.f32 %v1774, %v1936
      %v2017 = vadd.f32 %v1775, %v1938
      %v2018 = vadd.f32 %v1776, %v1941
      %v2019 = vadd.f32 %v1777, %v1943
      %v2020 = vadd.f32 %v1778, %v1946
      %v2021 = vadd.f32 %v1779, %v1948
      %v2022 = vadd.f32 %v1780, %v1951
      %v2023 = vadd.f32 %v1781, %v1953
      %v2024 = vadd.f32 %v1782, %v1956
      %v2025 = vadd.f32 %v1783, %v1958
      %v2026 = vadd.f32 %v1784, %v1961
      %v2027 = vadd.f32 %v1785, %v1963
      %v2028 = vld [vmem:[%s2] sm:$0x1]
      %v2030 = vperm.slane %v2028, 0
      %v2032 = vadd.f32 %v1996, %v2030
      %v2033 = vadd.f32 %v1997, %v2030
      %v2034 = vadd.f32 %v1998, %v2030
      %v2035 = vadd.f32 %v1999, %v2030
      %v2036 = vadd.f32 %v2000, %v2030
      %v2037 = vadd.f32 %v2001, %v2030
      %v2038 = vadd.f32 %v2002, %v2030
      %v2039 = vadd.f32 %v2003, %v2030
      %v2040 = vadd.f32 %v2004, %v2030
      %v2041 = vadd.f32 %v2005, %v2030
      %v2042 = vadd.f32 %v2006, %v2030
      %v2043 = vadd.f32 %v2007, %v2030
      %v2044 = vadd.f32 %v2008, %v2030
      %v2045 = vadd.f32 %v2009, %v2030
      %v2046 = vadd.f32 %v2010, %v2030
      %v2047 = vadd.f32 %v2011, %v2030
      %v2048 = vadd.f32 %v2012, %v2030
      %v2049 = vadd.f32 %v2013, %v2030
      %v2050 = vadd.f32 %v2014, %v2030
      %v2051 = vadd.f32 %v2015, %v2030
      %v2052 = vadd.f32 %v2016, %v2030
      %v2053 = vadd.f32 %v2017, %v2030
      %v2054 = vadd.f32 %v2018, %v2030
      %v2055 = vadd.f32 %v2019, %v2030
      %v2056 = vadd.f32 %v2020, %v2030
      %v2057 = vadd.f32 %v2021, %v2030
      %v2058 = vadd.f32 %v2022, %v2030
      %v2059 = vadd.f32 %v2023, %v2030
      %v2060 = vadd.f32 %v2024, %v2030
      %v2061 = vadd.f32 %v2025, %v2030
      %v2062 = vadd.f32 %v2026, %v2030
      %v2063 = vadd.f32 %v2027, %v2030
      %v2064 = vmax.f32 %v2032, 0.0
      %v2065 = vmax.f32 %v2033, 0.0
      %v2066 = vmax.f32 %v2034, 0.0
      %v2067 = vmax.f32 %v2035, 0.0
      %v2068 = vmax.f32 %v2036, 0.0
      %v2069 = vmax.f32 %v2037, 0.0
      %v2070 = vmax.f32 %v2038, 0.0
      %v2071 = vmax.f32 %v2039, 0.0
      %v2072 = vmax.f32 %v2040, 0.0
      %v2073 = vmax.f32 %v2041, 0.0
      %v2074 = vmax.f32 %v2042, 0.0
      %v2075 = vmax.f32 %v2043, 0.0
      %v2076 = vmax.f32 %v2044, 0.0
      %v2077 = vmax.f32 %v2045, 0.0
      %v2078 = vmax.f32 %v2046, 0.0
      %v2079 = vmax.f32 %v2047, 0.0
      %v2080 = vmax.f32 %v2048, 0.0
      %v2081 = vmax.f32 %v2049, 0.0
      %v2082 = vmax.f32 %v2050, 0.0
      %v2083 = vmax.f32 %v2051, 0.0
      %v2084 = vmax.f32 %v2052, 0.0
      %v2085 = vmax.f32 %v2053, 0.0
      %v2086 = vmax.f32 %v2054, 0.0
      %v2087 = vmax.f32 %v2055, 0.0
      %v2088 = vmax.f32 %v2056, 0.0
      %v2089 = vmax.f32 %v2057, 0.0
      %v2090 = vmax.f32 %v2058, 0.0
      %v2091 = vmax.f32 %v2059, 0.0
      %v2092 = vmax.f32 %v2060, 0.0
      %v2093 = vmax.f32 %v2061, 0.0
      %v2094 = vmax.f32 %v2062, 0.0
      %v2095 = vmax.f32 %v2063, 0.0
      %v2096 = vmin.f32 %v2064, 6.0
      %v2097 = vmin.f32 %v2065, 6.0
      %v2098 = vmin.f32 %v2066, 6.0
      %v2099 = vmin.f32 %v2067, 6.0
      %v2100 = vmin.f32 %v2068, 6.0
      %v2101 = vmin.f32 %v2069, 6.0
      %v2102 = vmin.f32 %v2070, 6.0
      %v2103 = vmin.f32 %v2071, 6.0
      %v2104 = vmin.f32 %v2072, 6.0
      %v2105 = vmin.f32 %v2073, 6.0
      %v2106 = vmin.f32 %v2074, 6.0
      %v2107 = vmin.f32 %v2075, 6.0
      %v2108 = vmin.f32 %v2076, 6.0
      %v2109 = vmin.f32 %v2077, 6.0
      %v2110 = vmin.f32 %v2078, 6.0
      %v2111 = vmin.f32 %v2079, 6.0
      %v2112 = vmin.f32 %v2080, 6.0
      %v2113 = vmin.f32 %v2081, 6.0
      %v2114 = vmin.f32 %v2082, 6.0
      %v2115 = vmin.f32 %v2083, 6.0
      %v2116 = vmin.f32 %v2084, 6.0
      %v2117 = vmin.f32 %v2085, 6.0
      %v2118 = vmin.f32 %v2086, 6.0
      %v2119 = vmin.f32 %v2087, 6.0
      %v2120 = vmin.f32 %v2088, 6.0
      %v2121 = vmin.f32 %v2089, 6.0
      %v2122 = vmin.f32 %v2090, 6.0
      %v2123 = vmin.f32 %v2091, 6.0
      %v2124 = vmin.f32 %v2092, 6.0
      %v2125 = vmin.f32 %v2093, 6.0
      %v2126 = vmin.f32 %v2094, 6.0
      %v2127 = vmin.f32 %v2095, 6.0
      %v2128 = vpack.c.bf16 %v2097, %v2096
      %v2129 = vpack.c.bf16 %v2099, %v2098
      %v2130 = vpack.c.bf16 %v2101, %v2100
      %v2131 = vpack.c.bf16 %v2103, %v2102
      %v2132 = vpack.c.bf16 %v2105, %v2104
      %v2133 = vpack.c.bf16 %v2107, %v2106
      %v2134 = vpack.c.bf16 %v2109, %v2108
      %v2135 = vpack.c.bf16 %v2111, %v2110
      %v2136 = vpack.c.bf16 %v2113, %v2112
      %v2137 = vpack.c.bf16 %v2115, %v2114
      %v2138 = vpack.c.bf16 %v2117, %v2116
      %v2139 = vpack.c.bf16 %v2119, %v2118
      %v2140 = vpack.c.bf16 %v2121, %v2120
      %v2141 = vpack.c.bf16 %v2123, %v2122
      %v2142 = vpack.c.bf16 %v2125, %v2124
      %v2143 = vpack.c.bf16 %v2127, %v2126
      %v2144 = vld [vmem:[%s3] sm:$0x3]
      %v2145 = vld [vmem:[%s4] sm:$0x1]
      %v2147 = vperm.slane %v2145, 0
      %vm2149 = vcmask 31744
      %v2151 = vsel %vm2149, %v2128, 0
      %v2154 = vsel %vm2149, %v2129, 0
      %v2157 = vsel %vm2149, %v2130, 0
      %v2160 = vsel %vm2149, %v2131, 0
      %v2163 = vsel %vm2149, %v2132, 0
      %v2166 = vsel %vm2149, %v2133, 0
      %v2169 = vsel %vm2149, %v2134, 0
      %v2172 = vsel %vm2149, %v2135, 0
      %v2175 = vsel %vm2149, %v2136, 0
      %v2178 = vsel %vm2149, %v2137, 0
      %v2181 = vsel %vm2149, %v2138, 0
      %v2184 = vsel %vm2149, %v2139, 0
      %v2187 = vsel %vm2149, %v2140, 0
      %v2190 = vsel %vm2149, %v2141, 0
      %v2193 = vsel %vm2149, %v2142, 0
      %v2196 = vsel %vm2149, %v2143, 0
      %vm2198 = vcmask 1041408
      %v2200 = vsel %vm2198, %v2144, 0
      %2202 = vmatpush.bf16.msra.mxu0 0
      %2203 = vmatpush.bf16.msra.mxu0 0
      %2204 = vmatpush.bf16.msra.mxu0 0
      %2205 = vmatpush.bf16.msra.mxu0 0
      %2206 = vmatpush.bf16.msra.mxu0 0
      %2207 = vmatpush.bf16.msra.mxu0 0
      %2208 = vmatpush.bf16.msra.mxu0 0
      %2209 = vmatpush.bf16.msra.mxu0 %v2200
      %2210 = vmatmul.bf16.gmra.mxu0 %v2151
      %v2211 = vpop.f32.mrf.mxu0
      %v2212 = vadd.f32 %v2147, %v2211
      %v2213 = vpop.f32.mrf.mxu0
      %v2214 = vadd.f32 %v2147, %v2213
      %2215 = vmatmul.bf16.gmra.mxu0 %v2154
      %v2216 = vpop.f32.mrf.mxu0
      %v2217 = vadd.f32 %v2147, %v2216
      %v2218 = vpop.f32.mrf.mxu0
      %v2219 = vadd.f32 %v2147, %v2218
      %2220 = vmatmul.bf16.gmra.mxu0 %v2157
      %v2221 = vpop.f32.mrf.mxu0
      %v2222 = vadd.f32 %v2147, %v2221
      %v2223 = vpop.f32.mrf.mxu0
      %v2224 = vadd.f32 %v2147, %v2223
      %2225 = vmatmul.bf16.gmra.mxu0 %v2160
      %v2226 = vpop.f32.mrf.mxu0
      %v2227 = vadd.f32 %v2147, %v2226
      %v2228 = vpop.f32.mrf.mxu0
      %v2229 = vadd.f32 %v2147, %v2228
      %2230 = vmatmul.bf16.gmra.mxu0 %v2163
      %v2231 = vpop.f32.mrf.mxu0
      %v2232 = vadd.f32 %v2147, %v2231
      %v2233 = vpop.f32.mrf.mxu0
      %v2234 = vadd.f32 %v2147, %v2233
      %2235 = vmatmul.bf16.gmra.mxu0 %v2166
      %v2236 = vpop.f32.mrf.mxu0
      %v2237 = vadd.f32 %v2147, %v2236
      %v2238 = vpop.f32.mrf.mxu0
      %v2239 = vadd.f32 %v2147, %v2238
      %2240 = vmatmul.bf16.gmra.mxu0 %v2169
      %v2241 = vpop.f32.mrf.mxu0
      %v2242 = vadd.f32 %v2147, %v2241
      %v2243 = vpop.f32.mrf.mxu0
      %v2244 = vadd.f32 %v2147, %v2243
      %2245 = vmatmul.bf16.gmra.mxu0 %v2172
      %v2246 = vpop.f32.mrf.mxu0
      %v2247 = vadd.f32 %v2147, %v2246
      %v2248 = vpop.f32.mrf.mxu0
      %v2249 = vadd.f32 %v2147, %v2248
      %2250 = vmatmul.bf16.gmra.mxu0 %v2175
      %v2251 = vpop.f32.mrf.mxu0
      %v2252 = vadd.f32 %v2147, %v2251
      %v2253 = vpop.f32.mrf.mxu0
      %v2254 = vadd.f32 %v2147, %v2253
      %2255 = vmatmul.bf16.gmra.mxu0 %v2178
      %v2256 = vpop.f32.mrf.mxu0
      %v2257 = vadd.f32 %v2147, %v2256
      %v2258 = vpop.f32.mrf.mxu0
      %v2259 = vadd.f32 %v2147, %v2258
      %2260 = vmatmul.bf16.gmra.mxu0 %v2181
      %v2261 = vpop.f32.mrf.mxu0
      %v2262 = vadd.f32 %v2147, %v2261
      %v2263 = vpop.f32.mrf.mxu0
      %v2264 = vadd.f32 %v2147, %v2263
      %2265 = vmatmul.bf16.gmra.mxu0 %v2184
      %v2266 = vpop.f32.mrf.mxu0
      %v2267 = vadd.f32 %v2147, %v2266
      %v2268 = vpop.f32.mrf.mxu0
      %v2269 = vadd.f32 %v2147, %v2268
      %2270 = vmatmul.bf16.gmra.mxu0 %v2187
      %v2271 = vpop.f32.mrf.mxu0
      %v2272 = vadd.f32 %v2147, %v2271
      %v2273 = vpop.f32.mrf.mxu0
      %v2274 = vadd.f32 %v2147, %v2273
      %2275 = vmatmul.bf16.gmra.mxu0 %v2190
      %v2276 = vpop.f32.mrf.mxu0
      %v2277 = vadd.f32 %v2147, %v2276
      %v2278 = vpop.f32.mrf.mxu0
      %v2279 = vadd.f32 %v2147, %v2278
      %2280 = vmatmul.bf16.gmra.mxu0 %v2193
      %v2281 = vpop.f32.mrf.mxu0
      %v2282 = vadd.f32 %v2147, %v2281
      %v2283 = vpop.f32.mrf.mxu0
      %v2284 = vadd.f32 %v2147, %v2283
      %2285 = vmatmul.bf16.gmra.mxu0 %v2196
      %v2286 = vpop.f32.mrf.mxu0
      %v2287 = vadd.f32 %v2147, %v2286
      %v2288 = vpop.f32.mrf.mxu0
      %v2289 = vadd.f32 %v2147, %v2288
      %2290 = vdwg.mxu0
      %v2291 = vmax.f32 %v2212, 0.0
      %v2292 = vmax.f32 %v2214, 0.0
      %v2293 = vmax.f32 %v2217, 0.0
      %v2294 = vmax.f32 %v2219, 0.0
      %v2295 = vmax.f32 %v2222, 0.0
      %v2296 = vmax.f32 %v2224, 0.0
      %v2297 = vmax.f32 %v2227, 0.0
      %v2298 = vmax.f32 %v2229, 0.0
      %v2299 = vmax.f32 %v2232, 0.0
      %v2300 = vmax.f32 %v2234, 0.0
      %v2301 = vmax.f32 %v2237, 0.0
      %v2302 = vmax.f32 %v2239, 0.0
      %v2303 = vmax.f32 %v2242, 0.0
      %v2304 = vmax.f32 %v2244, 0.0
      %v2305 = vmax.f32 %v2247, 0.0
      %v2306 = vmax.f32 %v2249, 0.0
      %v2307 = vmax.f32 %v2252, 0.0
      %v2308 = vmax.f32 %v2254, 0.0
      %v2309 = vmax.f32 %v2257, 0.0
      %v2310 = vmax.f32 %v2259, 0.0
      %v2311 = vmax.f32 %v2262, 0.0
      %v2312 = vmax.f32 %v2264, 0.0
      %v2313 = vmax.f32 %v2267, 0.0
      %v2314 = vmax.f32 %v2269, 0.0
      %v2315 = vmax.f32 %v2272, 0.0
      %v2316 = vmax.f32 %v2274, 0.0
      %v2317 = vmax.f32 %v2277, 0.0
      %v2318 = vmax.f32 %v2279, 0.0
      %v2319 = vmax.f32 %v2282, 0.0
      %v2320 = vmax.f32 %v2284, 0.0
      %v2321 = vmax.f32 %v2287, 0.0
      %v2322 = vmax.f32 %v2289, 0.0
      %v2323 = vmin.f32 %v2291, 6.0
      %v2324 = vmin.f32 %v2292, 6.0
      %v2325 = vmin.f32 %v2293, 6.0
      %v2326 = vmin.f32 %v2294, 6.0
      %v2327 = vmin.f32 %v2295, 6.0
      %v2328 = vmin.f32 %v2296, 6.0
      %v2329 = vmin.f32 %v2297, 6.0
      %v2330 = vmin.f32 %v2298, 6.0
      %v2331 = vmin.f32 %v2299, 6.0
      %v2332 = vmin.f32 %v2300, 6.0
      %v2333 = vmin.f32 %v2301, 6.0
      %v2334 = vmin.f32 %v2302, 6.0
      %v2335 = vmin.f32 %v2303, 6.0
      %v2336 = vmin.f32 %v2304, 6.0
      %v2337 = vmin.f32 %v2305, 6.0
      %v2338 = vmin.f32 %v2306, 6.0
      %v2339 = vmin.f32 %v2307, 6.0
      %v2340 = vmin.f32 %v2308, 6.0
      %v2341 = vmin.f32 %v2309, 6.0
      %v2342 = vmin.f32 %v2310, 6.0
      %v2343 = vmin.f32 %v2311, 6.0
      %v2344 = vmin.f32 %v2312, 6.0
      %v2345 = vmin.f32 %v2313, 6.0
      %v2346 = vmin.f32 %v2314, 6.0
      %v2347 = vmin.f32 %v2315, 6.0
      %v2348 = vmin.f32 %v2316, 6.0
      %v2349 = vmin.f32 %v2317, 6.0
      %v2350 = vmin.f32 %v2318, 6.0
      %v2351 = vmin.f32 %v2319, 6.0
      %v2352 = vmin.f32 %v2320, 6.0
      %v2353 = vmin.f32 %v2321, 6.0
      %v2354 = vmin.f32 %v2322, 6.0
      %vm2355 = vcmask 64512
      %2356 = vst.msk [vmem:[%s229] sm:$0xff] %vm2355, %v2323
      %2357 = vst.msk [vmem:[%s229 + $0x8] sm:$0xff] %vm2355, %v2324
      %2358 = vst.msk [vmem:[%s229 + $0x10] sm:$0xff] %vm2355, %v2325
      %2359 = vst.msk [vmem:[%s229 + $0x18] sm:$0xff] %vm2355, %v2326
      %2360 = vst.msk [vmem:[%s229 + $0x20] sm:$0xff] %vm2355, %v2327
      %2361 = vst.msk [vmem:[%s229 + $0x28] sm:$0xff] %vm2355, %v2328
      %2362 = vst.msk [vmem:[%s229 + $0x30] sm:$0xff] %vm2355, %v2329
      %2363 = vst.msk [vmem:[%s229 + $0x38] sm:$0xff] %vm2355, %v2330
      %2364 = vst.msk [vmem:[%s229 + $0x40] sm:$0xff] %vm2355, %v2331
      %2365 = vst.msk [vmem:[%s229 + $0x48] sm:$0xff] %vm2355, %v2332
      %2366 = vst.msk [vmem:[%s229 + $0x50] sm:$0xff] %vm2355, %v2333
      %2367 = vst.msk [vmem:[%s229 + $0x58] sm:$0xff] %vm2355, %v2334
      %2368 = vst.msk [vmem:[%s229 + $0x60] sm:$0xff] %vm2355, %v2335
      %2369 = vst.msk [vmem:[%s229 + $0x68] sm:$0xff] %vm2355, %v2336
      %2370 = vst.msk [vmem:[%s229 + $0x70] sm:$0xff] %vm2355, %v2337
      %2371 = vst.msk [vmem:[%s229 + $0x78] sm:$0xff] %vm2355, %v2338
      %2372 = vst.msk [vmem:[%s229 + $0x80] sm:$0xff] %vm2355, %v2339
      %2373 = vst.msk [vmem:[%s229 + $0x88] sm:$0xff] %vm2355, %v2340
      %2374 = vst.msk [vmem:[%s229 + $0x90] sm:$0xff] %vm2355, %v2341
      %2375 = vst.msk [vmem:[%s229 + $0x98] sm:$0xff] %vm2355, %v2342
      %2376 = vst.msk [vmem:[%s229 + $0xa0] sm:$0xff] %vm2355, %v2343
      %2377 = vst.msk [vmem:[%s229 + $0xa8] sm:$0xff] %vm2355, %v2344
      %2378 = vst.msk [vmem:[%s229 + $0xb0] sm:$0xff] %vm2355, %v2345
      %2379 = vst.msk [vmem:[%s229 + $0xb8] sm:$0xff] %vm2355, %v2346
      %2380 = vst.msk [vmem:[%s229 + $0xc0] sm:$0xff] %vm2355, %v2347
      %2381 = vst.msk [vmem:[%s229 + $0xc8] sm:$0xff] %vm2355, %v2348
      %2382 = vst.msk [vmem:[%s229 + $0xd0] sm:$0xff] %vm2355, %v2349
      %2383 = vst.msk [vmem:[%s229 + $0xd8] sm:$0xff] %vm2355, %v2350
      %2384 = vst.msk [vmem:[%s229 + $0xe0] sm:$0xff] %vm2355, %v2351
      %2385 = vst.msk [vmem:[%s229 + $0xe8] sm:$0xff] %vm2355, %v2352
      %2386 = vst.msk [vmem:[%s229 + $0xf0] sm:$0xff] %vm2355, %v2353
      %2387 = vst.msk [vmem:[%s229 + $0xf8] sm:$0xff] %vm2355, %v2354
      %s2388 = smul.u32 32, %s16
      %p2389 = scmp.lt.s32.totalorder %s2388, 63
      %s2390 = scalar_select %p2389, %s2388, 63
      %s2391 = smul.addr %s2390, 8
      %s2392 = scalar_lea.vmem %s5, %s2391
      // Predicated region
      $region41: #{depthwise_conv_block.1} parent=39 // pred_check
        %p2393 = pneg %p144
      $region42: #{depthwise_conv_block.1} parent=39 // pred_check_branch
        %2395 = sbr.rel (%p2393) target = $region44
      $region43: #{depthwise_conv_block.1} parent=39 // pred_region
        %s2396 = smul.u32 32, %s16
      $region44: #{depthwise_conv_block.1} parent=39 // pred_fallthru
        _
    $region40: #{depthwise_conv_block.1} parent=5 // pred_fallthru
      _
    %p2397 = scmp.le.s32.totalorder 2, %s11
    // Predicated region
    $region45: #{depthwise_conv_block.1} parent=5 // pred_check
      %p2398 = pneg %p2397
    $region46: #{depthwise_conv_block.1} parent=5 // pred_check_branch
      %2400 = sbr.rel (%p2398) target = $region48
    $region47: #{depthwise_conv_block.1} parent=5 // pred_region
      %s2401 = ssub.s32 %s11, 2
      // Predicated region
      $region49: #{depthwise_conv_block.1} parent=47 // pred_check
        %p2402 = pneg %p150
      $region50: #{depthwise_conv_block.1} parent=47 // pred_check_branch
        %2404 = sbr.rel (%p2402) target = $region52
      $region51: #{depthwise_conv_block.1} parent=47 // pred_region
        %s2405 = smul.u32 32, %s17
        %p2406 = scmp.lt.s32.totalorder %s2405, 63
        %s2407 = scalar_select %p2406, %s2405, 63
        %s2408 = smul.addr %s2407, 8
        %s2409 = scalar_lea.vmem %s5, %s2408
      $region52: #{depthwise_conv_block.1} parent=47 // pred_fallthru
        _
    $region48: #{depthwise_conv_block.1} parent=5 // pred_fallthru
      _
  $region6: #{depthwise_conv_block.1} parent=0 // loop_footer
    %s15 = sadd.s32 1, %s11
  $region7: #{depthwise_conv_block.1} parent=0 // loop_footer_branch
    %10 = sbr.rel target = $region3
  $region8: #{depthwise_conv_block.1} parent=0 // loop_exit
    _

</llo_original>
